<compile_context>
chip_gen: v7x
topology: tpu7x:2x2x1
jax: 0.10.0
libtpu: 0.0.40
codegen_flags: <defaults>
</compile_context>

<pallas_src>
import functools
import math

import jax
import jax.numpy as jnp
from jax import lax
from jax.experimental import pallas as pl
from jax.experimental.pallas import tpu as pltpu


# ----------------------------------------------------------------------------
# generation-aware VMEM budget
# ----------------------------------------------------------------------------
@functools.lru_cache(maxsize=None)
def _tpu_vmem_capacity():
    try:
        return int(pltpu.get_tpu_info().vmem_capacity_bytes)
    except Exception:
        return 64 * 1024 * 1024          # conservative fallback (v7x-sized)


def _vmem_limit_bytes():
    cap = _tpu_vmem_capacity()
    # leave ~16 MiB headroom for compiler scratch/spills; cap at 100 MiB on 128 MiB parts
    return int(max(min(cap - 16 * 1024 * 1024, 100 * 1024 * 1024), 32 * 1024 * 1024))


def _small_vmem():
    return _tpu_vmem_capacity() <= 64 * 1024 * 1024


# ----------------------------------------------------------------------------
# tiling helpers
# ----------------------------------------------------------------------------
def _pick_row_tile(M, target):
    """Row tile for token-parallel kernels.

    Returns either the full extent (always a legal block) or a multiple of 32
    (legal second-to-last block dim for f32 AND bf16 operands).  When M fits in
    one tile but can be split cleanly, split in two so v7x's 2 TensorCores both
    get work.
    """
    if M > target:
        return target                     # target is a multiple of 32
    if M >= 64 and M % 64 == 0:
        return M // 2                     # >=2 parallel grid steps
    return M                              # full extent


def _pick_q_tile(L, target=256):
    """Query-row tile for attention: full L, or a 32-multiple divisor of L."""
    if L <= target:
        return L
    for t in range(target, 31, -32):
        if L % t == 0:
            return t
    return L


def _pick_heads_per_block(n_heads, head_dim):
    """Smallest head group whose lane width (hb*E) is 128-aligned (or full D)."""
    d_model = n_heads * head_dim
    if d_model <= 128:
        return n_heads
    for hb in range(1, n_heads + 1):
        if n_heads % hb == 0 and (hb * head_dim) % 128 == 0:
            return hb
    return n_heads


def _pick_dff_chunk(Dff, target=512):
    """d_ff chunk (128-multiple divisor) bounding the live FFN activation."""
    if Dff <= target:
        return Dff
    for t in range(target, 127, -128):
        if Dff % t == 0:
            return t
    return Dff


# ----------------------------------------------------------------------------
# one-time weight preparation (avoids per-call XLA convert passes)
# ----------------------------------------------------------------------------
_MATMUL_WEIGHTS = ("wq", "wk", "wv", "wo", "w1", "w2")


def prepare_params(params, matmul_dtype=jnp.bfloat16):
    out = dict(params)
    for name in _MATMUL_WEIGHTS:
        out[name] = params[name].astype(matmul_dtype)
    return out


# ----------------------------------------------------------------------------
# Kernel 1: fused Q/K/V projection (x read from HBM once per row tile)
# ----------------------------------------------------------------------------
def _qkv_proj_kernel(x_ref, wq_ref, bq_ref, wk_ref, bk_ref, wv_ref, bv_ref,
                     q_ref, k_ref, v_ref):
    x = x_ref[...].astype(wq_ref.dtype)
    q_ref[...] = (jnp.dot(x, wq_ref[...], preferred_element_type=jnp.float32)
                  + bq_ref[...]).astype(q_ref.dtype)
    k_ref[...] = (jnp.dot(x, wk_ref[...], preferred_element_type=jnp.float32)
                  + bk_ref[...]).astype(k_ref.dtype)
    v_ref[...] = (jnp.dot(x, wv_ref[...], preferred_element_type=jnp.float32)
                  + bv_ref[...]).astype(v_ref.dtype)


def qkv_projection(x_flat, p, *, matmul_dtype, bm_target=256):
    M, D = x_flat.shape
    bm = _pick_row_tile(M, bm_target)
    grid = (pl.cdiv(M, bm),)              # partial last block: tail writes clipped

    row = pl.BlockSpec((bm, D), lambda i: (i, 0))
    wspec = pl.BlockSpec((D, D), lambda i: (0, 0))     # resident weights
    bspec = pl.BlockSpec((1, D), lambda i: (0, 0))

    w_bytes = jnp.dtype(p["wq"].dtype).itemsize
    out_bytes = jnp.dtype(matmul_dtype).itemsize
    cost = pl.CostEstimate(
        flops=int(6 * M * D * D),
        transcendentals=0,
        bytes_accessed=int(M * D * 4 + 3 * D * D * w_bytes + 3 * M * D * out_bytes))

    q, k, v = pl.pallas_call(
        _qkv_proj_kernel,
        out_shape=tuple(jax.ShapeDtypeStruct((M, D), matmul_dtype) for _ in range(3)),
        grid=grid,
        in_specs=[row, wspec, bspec, wspec, bspec, wspec, bspec],
        out_specs=(row, row, row),
        compiler_params=pltpu.CompilerParams(
            dimension_semantics=("parallel",),
            vmem_limit_bytes=_vmem_limit_bytes()),
        cost_estimate=cost,
    )(x_flat, p["wq"], p["bq"], p["wk"], p["bk"], p["wv"], p["bv"])
    return q, k, v


# ----------------------------------------------------------------------------
# Kernel 2: scaled-dot-product attention.
# Grid = (batch, head-group, q-tile); q-tile is innermost so K/V (constant index
# across it) stay resident in VMEM.  One lane-dense store per q tile.
# ----------------------------------------------------------------------------
def _attn_kernel(q_ref, k_ref, v_ref, o_ref, *attn_ref,
                 heads_in_block, head_dim, scale, matmul_dtype, approx_recip):
    E = head_dim
    q_all = q_ref[0].astype(matmul_dtype)       # (tq, hb*E)  single load
    k_all = k_ref[0].astype(matmul_dtype)       # (L,  hb*E)
    v_all = v_ref[0].astype(matmul_dtype)
    parts = []
    for i in range(heads_in_block):             # static unroll over head group
        q = q_all[:, i * E:(i + 1) * E]
        k = k_all[:, i * E:(i + 1) * E]
        v = v_all[:, i * E:(i + 1) * E]
        # q @ k.T without materializing a transpose
        s = lax.dot_general(q, k, (((1,), (1,)), ((), ())),
                            preferred_element_type=jnp.float32) * scale
        m = jnp.max(s, axis=-1, keepdims=True)
        e = jnp.exp(s - m)
        denom = jnp.sum(e, axis=-1, keepdims=True)
        # exact reciprocal when the weights are returned (rows sum to 1);
        # approx (EUP slot) when they are not.
        a = e * pl.reciprocal(denom, approx=approx_recip)
        parts.append(jnp.dot(a.astype(matmul_dtype), v,
                             preferred_element_type=jnp.float32))
        if attn_ref:
            attn_ref[0][0, i] = a.astype(attn_ref[0].dtype)
    # single full-width (lane-dense) context store for the head group
    o_ref[0] = jnp.concatenate(parts, axis=-1).astype(o_ref.dtype)


def mha_core(q, k, v, *, n_batch, seq_len, n_heads, matmul_dtype,
             return_attn=True, attn_dtype=jnp.float32, tq_target=256):
    M, D = q.shape
    B, L, H = n_batch, seq_len, n_heads
    E = D // H
    hb = _pick_heads_per_block(H, E)
    n_groups = H // hb
    tq = _pick_q_tile(L, tq_target)
    n_qt = L // tq
    scale = 1.0 / math.sqrt(E)

    # free reshapes to the [B, L, D] view (no data movement)
    q3 = q.reshape(B, L, D)
    k3 = k.reshape(B, L, D)
    v3 = v.reshape(B, L, D)

    q_spec = pl.BlockSpec((1, tq, hb * E), lambda b, g, qi: (b, qi, g))
    kv_spec = pl.BlockSpec((1, L, hb * E), lambda b, g, qi: (b, 0, g))

    out_shapes = [jax.ShapeDtypeStruct((B, L, D), matmul_dtype)]
    out_specs = [pl.BlockSpec((1, tq, hb * E), lambda b, g, qi: (b, qi, g))]
    if return_attn:
        out_shapes.append(jax.ShapeDtypeStruct((B, H, L, L), attn_dtype))
        out_specs.append(
            pl.BlockSpec((1, hb, tq, L), lambda b, g, qi: (b, g, qi, 0)))

    io_bytes = 4 * B * L * D * jnp.dtype(matmul_dtype).itemsize
    if return_attn:
        io_bytes += B * H * L * L * jnp.dtype(attn_dtype).itemsize
    cost = pl.CostEstimate(
        flops=int(4 * B * H * L * L * E),
        transcendentals=int(B * H * L * L),
        bytes_accessed=int(io_bytes))

    kernel = functools.partial(_attn_kernel, heads_in_block=hb, head_dim=E,
                               scale=scale, matmul_dtype=matmul_dtype,
                               approx_recip=not return_attn)
    outs = pl.pallas_call(
        kernel,
        out_shape=tuple(out_shapes),
        grid=(B, n_groups, n_qt),                     # q-tile innermost: K/V resident
        in_specs=[q_spec, kv_spec, kv_spec],
        out_specs=tuple(out_specs),
        compiler_params=pltpu.CompilerParams(
            dimension_semantics=("parallel", "parallel", "parallel"),
            vmem_limit_bytes=_vmem_limit_bytes()),
        cost_estimate=cost,
    )(q3, k3, v3)

    ctx = outs[0].reshape(M, D)
    attn = outs[1] if return_attn else None
    return ctx, attn


# ----------------------------------------------------------------------------
# Kernel 3: fused  out-projection + residual + norm1 + conv1(1x1)+relu
#                  + conv2(1x1) + residual + norm2   (d_ff processed in chunks)
# ----------------------------------------------------------------------------
def _out_ffn_kernel(x_ref, ctx_ref, wo_ref, bo_ref, g1_ref, be1_ref,
                    w1_ref, b1_ref, w2_ref, b2_ref, g2_ref, be2_ref, out_ref,
                    *, dff_chunk):
    eps = 1e-5
    cdt = wo_ref.dtype
    # new_x = attention out-projection (fused: no HBM round-trip for new_x)
    new_x = jnp.dot(ctx_ref[...].astype(cdt), wo_ref[...],
                    preferred_element_type=jnp.float32) + bo_ref[...]
    # x = x + dropout(new_x)   (dropout == identity in eval mode)
    x1 = x_ref[...] + new_x
    # y = x = norm1(x)
    mu = jnp.mean(x1, axis=-1, keepdims=True)
    var = jnp.mean(jnp.square(x1 - mu), axis=-1, keepdims=True)
    y = (x1 - mu) * lax.rsqrt(var + eps) * g1_ref[...] + be1_ref[...]
    yc = y.astype(cdt)
    # y = dropout(conv2(dropout(relu(conv1(y)))))  -- Conv1d(k=1) == per-token matmul,
    # d_ff processed in chunks so the live activation stays small & bf16.
    Dff = w1_ref.shape[1]
    D = w2_ref.shape[1]
    z = jnp.zeros((y.shape[0], D), jnp.float32)
    for c0 in range(0, Dff, dff_chunk):
        c1 = c0 + dff_chunk
        h = jnp.maximum(
            jnp.dot(yc, w1_ref[:, c0:c1], preferred_element_type=jnp.float32)
            + b1_ref[:, c0:c1], 0.0).astype(cdt)
        z = z + jnp.dot(h, w2_ref[c0:c1, :], preferred_element_type=jnp.float32)
    z = z + b2_ref[...]
    # norm2(x + y)
    r = y + z
    mu2 = jnp.mean(r, axis=-1, keepdims=True)
    var2 = jnp.mean(jnp.square(r - mu2), axis=-1, keepdims=True)
    out_ref[...] = ((r - mu2) * lax.rsqrt(var2 + eps) * g2_ref[...]
                    + be2_ref[...]).astype(out_ref.dtype)


def out_proj_ffn(x_flat, ctx, p, *, bm_target=None):
    M, D = x_flat.shape
    Dff = p["w1"].shape[1]
    if bm_target is None:
        bm_target = 128 if _small_vmem() else 256     # v7x: smaller row tile
    bm = _pick_row_tile(M, bm_target)
    grid = (pl.cdiv(M, bm),)
    dff_chunk = _pick_dff_chunk(Dff)

    row = pl.BlockSpec((bm, D), lambda i: (i, 0))

    def full(shape):
        return pl.BlockSpec(shape, lambda i: (0, 0))   # resident params

    w_bytes = jnp.dtype(p["wo"].dtype).itemsize
    c_bytes = jnp.dtype(ctx.dtype).itemsize
    cost = pl.CostEstimate(
        flops=int(2 * M * D * D + 4 * M * D * Dff + 12 * M * D),
        transcendentals=int(2 * M),
        bytes_accessed=int(M * D * 4 + M * D * c_bytes
                           + (D * D + 2 * D * Dff) * w_bytes + M * D * 4))

    kernel = functools.partial(_out_ffn_kernel, dff_chunk=dff_chunk)
    out = pl.pallas_call(
        kernel,
        out_shape=jax.ShapeDtypeStruct((M, D), jnp.float32),
        grid=grid,
        in_specs=[row, row,
                  full((D, D)), full((1, D)),          # wo, bo
                  full((1, D)), full((1, D)),          # norm1 gamma/beta
                  full((D, Dff)), full((1, Dff)),      # conv1 w/b
                  full((Dff, D)), full((1, D)),        # conv2 w/b
                  full((1, D)), full((1, D))],         # norm2 gamma/beta
        out_specs=row,
        compiler_params=pltpu.CompilerParams(
            dimension_semantics=("parallel",),
            vmem_limit_bytes=_vmem_limit_bytes()),
        cost_estimate=cost,
    )(x_flat, ctx,
      p["wo"], p["bo"], p["g1"], p["be1"],
      p["w1"], p["b1"], p["w2"], p["b2"], p["g2"], p["be2"])
    return out


# ----------------------------------------------------------------------------
# Full EncoderLayer forward
# ----------------------------------------------------------------------------
def encoder_layer(x, params, *, n_heads, matmul_dtype=jnp.bfloat16,
                  return_attn=True, attn_dtype=jnp.float32, bm_target=256):
    """params matmul weights should be pre-cast via prepare_params() (no per-call casts)."""
    B, L, D = x.shape
    assert D % n_heads == 0

    xf = x.reshape(B * L, D)
    q, k, v = qkv_projection(xf, params, matmul_dtype=matmul_dtype,
                             bm_target=bm_target)
    ctx, attn = mha_core(q, k, v, n_batch=B, seq_len=L, n_heads=n_heads,
                         matmul_dtype=matmul_dtype, return_attn=return_attn,
                         attn_dtype=attn_dtype)
    out = out_proj_ffn(xf, ctx, params)
    return out.reshape(B, L, D), attn


# ----------------------------------------------------------------------------
# Parameters + pure-JAX reference (for correctness check)
# ----------------------------------------------------------------------------
def init_params(key, d_model, d_ff, n_heads):
    ks = jax.random.split(key, 12)
    s = 0.02
    return {
        "wq": s * jax.random.normal(ks[0], (d_model, d_model), jnp.float32),
        "bq": s * jax.random.normal(ks[1], (1, d_model), jnp.float32),
        "wk": s * jax.random.normal(ks[2], (d_model, d_model), jnp.float32),
        "bk": s * jax.random.normal(ks[3], (1, d_model), jnp.float32),
        "wv": s * jax.random.normal(ks[4], (d_model, d_model), jnp.float32),
        "bv": s * jax.random.normal(ks[5], (1, d_model), jnp.float32),
        "wo": s * jax.random.normal(ks[6], (d_model, d_model), jnp.float32),
        "bo": s * jax.random.normal(ks[7], (1, d_model), jnp.float32),
        # Conv1d(kernel_size=1) weights stored as [in, out] matrices
        "w1": s * jax.random.normal(ks[8], (d_model, d_ff), jnp.float32),
        "b1": s * jax.random.normal(ks[9], (1, d_ff), jnp.float32),
        "w2": s * jax.random.normal(ks[10], (d_ff, d_model), jnp.float32),
        "b2": s * jax.random.normal(ks[11], (1, d_model), jnp.float32),
        "g1": jnp.ones((1, d_model), jnp.float32),
        "be1": jnp.zeros((1, d_model), jnp.float32),
        "g2": jnp.ones((1, d_model), jnp.float32),
        "be2": jnp.zeros((1, d_model), jnp.float32),
    }


def encoder_layer_reference(x, p, *, n_heads):
    B, L, D = x.shape
    E = D // n_heads
    eps = 1e-5
    xf = x.reshape(B * L, D)
    q = xf @ p["wq"] + p["bq"]
    k = xf @ p["wk"] + p["bk"]
    v = xf @ p["wv"] + p["bv"]
    qh = q.reshape(B, L, n_heads, E)
    kh = k.reshape(B, L, n_heads, E)
    vh = v.reshape(B, L, n_heads, E)
    scores = jnp.einsum("blhe,bshe->bhls", qh, kh) / math.sqrt(E)
    A = jax.nn.softmax(scores, axis=-1)
    ctx = jnp.einsum("bhls,bshe->blhe", A, vh).reshape(B * L, D)
    new_x = ctx @ p["wo"] + p["bo"]
    x1 = xf + new_x
    mu = x1.mean(-1, keepdims=True)
    var = ((x1 - mu) ** 2).mean(-1, keepdims=True)
    y = (x1 - mu) * jax.lax.rsqrt(var + eps) * p["g1"] + p["be1"]
    h = jnp.maximum(y @ p["w1"] + p["b1"], 0.0)
    z = h @ p["w2"] + p["b2"]
    r = y + z
    mu2 = r.mean(-1, keepdims=True)
    var2 = ((r - mu2) ** 2).mean(-1, keepdims=True)
    out = (r - mu2) * jax.lax.rsqrt(var2 + eps) * p["g2"] + p["be2"]
    return out.reshape(B, L, D), A


if __name__ == "__main__":
    B, L, d_model, n_heads = 2, 8, 32, 4
    d_ff = 4 * d_model  # 128

    key = jax.random.PRNGKey(0)
    k_x, k_p = jax.random.split(key)
    x = jax.random.normal(k_x, (B, L, d_model), jnp.float32)
    params = init_params(k_p, d_model, d_ff, n_heads)
    run_params = prepare_params(params, jnp.bfloat16)   # one-time weight cast (not per call)

    fwd = jax.jit(functools.partial(encoder_layer, n_heads=n_heads))
    out, attn = fwd(x, run_params)
    out = jax.block_until_ready(out)
    attn = jax.block_until_ready(attn)

    ref_out, ref_attn = encoder_layer_reference(x, params, n_heads=n_heads)

    assert out.shape == (B, L, d_model)
    assert attn.shape == (B, n_heads, L, L)
    assert bool(jnp.all(jnp.isfinite(out)))
    # bf16-MXU numerics vs f32 reference
    assert float(jnp.max(jnp.abs(out - ref_out))) < 5e-2
    assert float(jnp.max(jnp.abs(attn - ref_attn))) < 5e-2
    print("KERNEL_OK")
</pallas_src>

<mosaic_0001>
module attributes {stable_mosaic.version = 11 : i64} {
  func.func @_qkv_proj_kernel(%arg0: i32, %arg1: memref<16x32xf32, #tpu.memory_space<vmem>>, %arg2: memref<32x32xbf16, #tpu.memory_space<vmem>>, %arg3: memref<1x32xf32, #tpu.memory_space<vmem>>, %arg4: memref<32x32xbf16, #tpu.memory_space<vmem>>, %arg5: memref<1x32xf32, #tpu.memory_space<vmem>>, %arg6: memref<32x32xbf16, #tpu.memory_space<vmem>>, %arg7: memref<1x32xf32, #tpu.memory_space<vmem>>, %arg8: memref<16x32xbf16, #tpu.memory_space<vmem>>, %arg9: memref<16x32xbf16, #tpu.memory_space<vmem>>, %arg10: memref<16x32xbf16, #tpu.memory_space<vmem>>) attributes {dimension_semantics = [#tpu.dimension_semantics<parallel>], iteration_bounds = array<i64: 1>, scalar_prefetch = 0 : i64, scratch_operands = 0 : i64, tpu.core_type = #tpu.core_type<tc>, window_params = [{transform_indices = @transform_0, window_bounds = array<i64: 16, 32>}, {pipeline_mode = #tpu.pipeline_mode<synchronous>, transform_indices = @transform_1, window_bounds = array<i64: 32, 32>}, {pipeline_mode = #tpu.pipeline_mode<synchronous>, transform_indices = @transform_2, window_bounds = array<i64: 1, 32>}, {pipeline_mode = #tpu.pipeline_mode<synchronous>, transform_indices = @transform_3, window_bounds = array<i64: 32, 32>}, {pipeline_mode = #tpu.pipeline_mode<synchronous>, transform_indices = @transform_4, window_bounds = array<i64: 1, 32>}, {pipeline_mode = #tpu.pipeline_mode<synchronous>, transform_indices = @transform_5, window_bounds = array<i64: 32, 32>}, {pipeline_mode = #tpu.pipeline_mode<synchronous>, transform_indices = @transform_6, window_bounds = array<i64: 1, 32>}, {transform_indices = @transform_7, window_bounds = array<i64: 16, 32>}, {transform_indices = @transform_8, window_bounds = array<i64: 16, 32>}, {transform_indices = @transform_9, window_bounds = array<i64: 16, 32>}]} {
    %c0 = arith.constant 0 : index
    %c0_0 = arith.constant 0 : index
    %0 = vector.load %arg1[%c0, %c0_0] : memref<16x32xf32, #tpu.memory_space<vmem>>, vector<16x32xf32>
    %1 = arith.truncf %0 : vector<16x32xf32> to vector<16x32xbf16>
    %c0_1 = arith.constant 0 : index
    %c0_2 = arith.constant 0 : index
    %2 = vector.load %arg2[%c0_1, %c0_2] : memref<32x32xbf16, #tpu.memory_space<vmem>>, vector<32x32xbf16>
    %cst = arith.constant dense<0.000000e+00> : vector<16x32xf32>
    %3 = tpu.matmul %1, %2, %cst {dimension_numbers = #tpu.dot_dimension_numbers<[1], [0], [0], [1], [0, 0, 1, 1], [], []>} : vector<16x32xbf16>, vector<32x32xbf16>, vector<16x32xf32> -> vector<16x32xf32>
    %c0_3 = arith.constant 0 : index
    %c0_4 = arith.constant 0 : index
    %4 = vector.load %arg3[%c0_3, %c0_4] : memref<1x32xf32, #tpu.memory_space<vmem>>, vector<1x32xf32>
    %5 = vector.broadcast %4 : vector<1x32xf32> to vector<16x32xf32>
    %6 = arith.addf %3, %5 : vector<16x32xf32>
    %7 = arith.truncf %6 : vector<16x32xf32> to vector<16x32xbf16>
    %c0_5 = arith.constant 0 : index
    %c0_6 = arith.constant 0 : index
    %8 = vector.load %arg8[%c0_5, %c0_6] : memref<16x32xbf16, #tpu.memory_space<vmem>>, vector<16x32xbf16>
    tpu.vector_store %arg8[%c0_5, %c0_6], %7 {strides = array<i32>} : memref<16x32xbf16, #tpu.memory_space<vmem>>, vector<16x32xbf16>,
    %c0_7 = arith.constant 0 : index
    %c0_8 = arith.constant 0 : index
    %9 = vector.load %arg4[%c0_7, %c0_8] : memref<32x32xbf16, #tpu.memory_space<vmem>>, vector<32x32xbf16>
    %cst_9 = arith.constant dense<0.000000e+00> : vector<16x32xf32>
    %10 = tpu.matmul %1, %9, %cst_9 {dimension_numbers = #tpu.dot_dimension_numbers<[1], [0], [0], [1], [0, 0, 1, 1], [], []>} : vector<16x32xbf16>, vector<32x32xbf16>, vector<16x32xf32> -> vector<16x32xf32>
    %c0_10 = arith.constant 0 : index
    %c0_11 = arith.constant 0 : index
    %11 = vector.load %arg5[%c0_10, %c0_11] : memref<1x32xf32, #tpu.memory_space<vmem>>, vector<1x32xf32>
    %12 = vector.broadcast %11 : vector<1x32xf32> to vector<16x32xf32>
    %13 = arith.addf %10, %12 : vector<16x32xf32>
    %14 = arith.truncf %13 : vector<16x32xf32> to vector<16x32xbf16>
    %c0_12 = arith.constant 0 : index
    %c0_13 = arith.constant 0 : index
    %15 = vector.load %arg9[%c0_12, %c0_13] : memref<16x32xbf16, #tpu.memory_space<vmem>>, vector<16x32xbf16>
    tpu.vector_store %arg9[%c0_12, %c0_13], %14 {strides = array<i32>} : memref<16x32xbf16, #tpu.memory_space<vmem>>, vector<16x32xbf16>,
    %c0_14 = arith.constant 0 : index
    %c0_15 = arith.constant 0 : index
    %16 = vector.load %arg6[%c0_14, %c0_15] : memref<32x32xbf16, #tpu.memory_space<vmem>>, vector<32x32xbf16>
    %cst_16 = arith.constant dense<0.000000e+00> : vector<16x32xf32>
    %17 = tpu.matmul %1, %16, %cst_16 {dimension_numbers = #tpu.dot_dimension_numbers<[1], [0], [0], [1], [0, 0, 1, 1], [], []>} : vector<16x32xbf16>, vector<32x32xbf16>, vector<16x32xf32> -> vector<16x32xf32>
    %c0_17 = arith.constant 0 : index
    %c0_18 = arith.constant 0 : index
    %18 = vector.load %arg7[%c0_17, %c0_18] : memref<1x32xf32, #tpu.memory_space<vmem>>, vector<1x32xf32>
    %19 = vector.broadcast %18 : vector<1x32xf32> to vector<16x32xf32>
    %20 = arith.addf %17, %19 : vector<16x32xf32>
    %21 = arith.truncf %20 : vector<16x32xf32> to vector<16x32xbf16>
    %c0_19 = arith.constant 0 : index
    %c0_20 = arith.constant 0 : index
    %22 = vector.load %arg10[%c0_19, %c0_20] : memref<16x32xbf16, #tpu.memory_space<vmem>>, vector<16x32xbf16>
    tpu.vector_store %arg10[%c0_19, %c0_20], %21 {strides = array<i32>} : memref<16x32xbf16, #tpu.memory_space<vmem>>, vector<16x32xbf16>,
    return
  }
  func.func @transform_0(%arg0: i32) -> (i32, i32) {
    %c0_i32 = arith.constant 0 : i32
    %c0_i32_0 = arith.constant 0 : i32
    return %arg0, %c0_i32 : i32, i32
  }
  func.func @transform_1(%arg0: i32) -> (i32, i32) {
    %c0_i32 = arith.constant 0 : i32
    %c0_i32_0 = arith.constant 0 : i32
    %c0_i32_1 = arith.constant 0 : i32
    return %c0_i32, %c0_i32_0 : i32, i32
  }
  func.func @transform_2(%arg0: i32) -> (i32, i32) {
    %c0_i32 = arith.constant 0 : i32
    %c0_i32_0 = arith.constant 0 : i32
    %c0_i32_1 = arith.constant 0 : i32
    return %c0_i32, %c0_i32_0 : i32, i32
  }
  func.func @transform_3(%arg0: i32) -> (i32, i32) {
    %c0_i32 = arith.constant 0 : i32
    %c0_i32_0 = arith.constant 0 : i32
    %c0_i32_1 = arith.constant 0 : i32
    return %c0_i32, %c0_i32_0 : i32, i32
  }
  func.func @transform_4(%arg0: i32) -> (i32, i32) {
    %c0_i32 = arith.constant 0 : i32
    %c0_i32_0 = arith.constant 0 : i32
    %c0_i32_1 = arith.constant 0 : i32
    return %c0_i32, %c0_i32_0 : i32, i32
  }
  func.func @transform_5(%arg0: i32) -> (i32, i32) {
    %c0_i32 = arith.constant 0 : i32
    %c0_i32_0 = arith.constant 0 : i32
    %c0_i32_1 = arith.constant 0 : i32
    return %c0_i32, %c0_i32_0 : i32, i32
  }
  func.func @transform_6(%arg0: i32) -> (i32, i32) {
    %c0_i32 = arith.constant 0 : i32
    %c0_i32_0 = arith.constant 0 : i32
    %c0_i32_1 = arith.constant 0 : i32
    return %c0_i32, %c0_i32_0 : i32, i32
  }
  func.func @transform_7(%arg0: i32) -> (i32, i32) {
    %c0_i32 = arith.constant 0 : i32
    %c0_i32_0 = arith.constant 0 : i32
    return %arg0, %c0_i32 : i32, i32
  }
  func.func @transform_8(%arg0: i32) -> (i32, i32) {
    %c0_i32 = arith.constant 0 : i32
    %c0_i32_0 = arith.constant 0 : i32
    return %arg0, %c0_i32 : i32, i32
  }
  func.func @transform_9(%arg0: i32) -> (i32, i32) {
    %c0_i32 = arith.constant 0 : i32
    %c0_i32_0 = arith.constant 0 : i32
    return %arg0, %c0_i32 : i32, i32
  }
}

module attributes {stable_mosaic.version = 11 : i64} {
  func.func @_attn_kernel(%arg0: i32, %arg1: i32, %arg2: i32, %arg3: memref<1x8x32xbf16, #tpu.memory_space<vmem>>, %arg4: memref<1x8x32xbf16, #tpu.memory_space<vmem>>, %arg5: memref<1x8x32xbf16, #tpu.memory_space<vmem>>, %arg6: memref<1x8x32xbf16, #tpu.memory_space<vmem>>, %arg7: memref<1x4x8x8xf32, #tpu.memory_space<vmem>>) attributes {dimension_semantics = [#tpu.dimension_semantics<parallel>, #tpu.dimension_semantics<parallel>, #tpu.dimension_semantics<parallel>], iteration_bounds = array<i64: 2, 1, 1>, scalar_prefetch = 0 : i64, scratch_operands = 0 : i64, tpu.core_type = #tpu.core_type<tc>, window_params = [{transform_indices = @transform_0, window_bounds = array<i64: 1, 8, 32>}, {transform_indices = @transform_1, window_bounds = array<i64: 1, 8, 32>}, {transform_indices = @transform_2, window_bounds = array<i64: 1, 8, 32>}, {transform_indices = @transform_3, window_bounds = array<i64: 1, 8, 32>}, {transform_indices = @transform_4, window_bounds = array<i64: 1, 4, 8, 8>}]} {
    %c0 = arith.constant 0 : index
    %c0_0 = arith.constant 0 : index
    %c0_1 = arith.constant 0 : index
    %0 = vector.load %arg3[%c0, %c0_0, %c0_1] : memref<1x8x32xbf16, #tpu.memory_space<vmem>>, vector<1x8x32xbf16>
    %1 = vector.shape_cast %0 : vector<1x8x32xbf16> to vector<8x32xbf16>
    %c0_2 = arith.constant 0 : index
    %c0_3 = arith.constant 0 : index
    %c0_4 = arith.constant 0 : index
    %2 = vector.load %arg4[%c0_2, %c0_3, %c0_4] : memref<1x8x32xbf16, #tpu.memory_space<vmem>>, vector<1x8x32xbf16>
    %3 = vector.shape_cast %2 : vector<1x8x32xbf16> to vector<8x32xbf16>
    %c0_5 = arith.constant 0 : index
    %c0_6 = arith.constant 0 : index
    %c0_7 = arith.constant 0 : index
    %4 = vector.load %arg5[%c0_5, %c0_6, %c0_7] : memref<1x8x32xbf16, #tpu.memory_space<vmem>>, vector<1x8x32xbf16>
    %5 = vector.shape_cast %4 : vector<1x8x32xbf16> to vector<8x32xbf16>
    %6 = vector.extract_strided_slice %1 {offsets = [0, 0], sizes = [8, 8], strides = [1, 1]} : vector<8x32xbf16> to vector<8x8xbf16>
    %7 = vector.extract_strided_slice %3 {offsets = [0, 0], sizes = [8, 8], strides = [1, 1]} : vector<8x32xbf16> to vector<8x8xbf16>
    %8 = vector.extract_strided_slice %5 {offsets = [0, 0], sizes = [8, 8], strides = [1, 1]} : vector<8x32xbf16> to vector<8x8xbf16>
    %cst = arith.constant dense<0.000000e+00> : vector<8x8xf32>
    %9 = tpu.matmul %6, %7, %cst {dimension_numbers = #tpu.dot_dimension_numbers<[1], [1], [0], [0], [0, 0, 1, 0], [], []>} : vector<8x8xbf16>, vector<8x8xbf16>, vector<8x8xf32> -> vector<8x8xf32>
    %cst_8 = arith.constant 0.353553385 : f32
    %10 = vector.broadcast %cst_8 : f32 to vector<8x8xf32>
    %11 = arith.mulf %9, %10 : vector<8x8xf32>
    %cst_9 = arith.constant dense<0xFF800000> : vector<8xf32>
    %12 = vector.multi_reduction <maximumf>, %11, %cst_9 [1] : vector<8x8xf32> to vector<8xf32>
    %13 = vector.shape_cast %12 : vector<8xf32> to vector<8x1xf32>
    %14 = vector.broadcast %13 : vector<8x1xf32> to vector<8x8xf32>
    %15 = arith.subf %11, %14 : vector<8x8xf32>
    %16 = math.exp %15 : vector<8x8xf32>
    %cst_10 = arith.constant dense<0.000000e+00> : vector<8xf32>
    %17 = vector.multi_reduction <add>, %16, %cst_10 [1] : vector<8x8xf32> to vector<8xf32>
    %18 = vector.shape_cast %17 : vector<8xf32> to vector<8x1xf32>
    %19 = tpu.reciprocal %18 : vector<8x1xf32> -> vector<8x1xf32>
    %20 = vector.broadcast %19 : vector<8x1xf32> to vector<8x8xf32>
    %21 = arith.mulf %16, %20 : vector<8x8xf32>
    %22 = arith.truncf %21 : vector<8x8xf32> to vector<8x8xbf16>
    %cst_11 = arith.constant dense<0.000000e+00> : vector<8x8xf32>
    %23 = tpu.matmul %22, %8, %cst_11 {dimension_numbers = #tpu.dot_dimension_numbers<[1], [0], [0], [1], [0, 0, 1, 1], [], []>} : vector<8x8xbf16>, vector<8x8xbf16>, vector<8x8xf32> -> vector<8x8xf32>
    %c0_12 = arith.constant 0 : index
    %c0_13 = arith.constant 0 : index
    %c0_14 = arith.constant 0 : index
    %c0_15 = arith.constant 0 : index
    %24 = vector.load %arg7[%c0_12, %c0_13, %c0_14, %c0_15] : memref<1x4x8x8xf32, #tpu.memory_space<vmem>>, vector<1x1x8x8xf32>
    %25 = vector.shape_cast %24 : vector<1x1x8x8xf32> to vector<8x8xf32>
    %26 = vector.shape_cast %21 : vector<8x8xf32> to vector<1x1x8x8xf32>
    tpu.vector_store %arg7[%c0_12, %c0_13, %c0_14, %c0_15], %26 {strides = array<i32>} : memref<1x4x8x8xf32, #tpu.memory_space<vmem>>, vector<1x1x8x8xf32>,
    %27 = vector.extract_strided_slice %1 {offsets = [0, 8], sizes = [8, 8], strides = [1, 1]} : vector<8x32xbf16> to vector<8x8xbf16>
    %28 = vector.extract_strided_slice %3 {offsets = [0, 8], sizes = [8, 8], strides = [1, 1]} : vector<8x32xbf16> to vector<8x8xbf16>
    %29 = vector.extract_strided_slice %5 {offsets = [0, 8], sizes = [8, 8], strides = [1, 1]} : vector<8x32xbf16> to vector<8x8xbf16>
    %cst_16 = arith.constant dense<0.000000e+00> : vector<8x8xf32>
    %30 = tpu.matmul %27, %28, %cst_16 {dimension_numbers = #tpu.dot_dimension_numbers<[1], [1], [0], [0], [0, 0, 1, 0], [], []>} : vector<8x8xbf16>, vector<8x8xbf16>, vector<8x8xf32> -> vector<8x8xf32>
    %cst_17 = arith.constant 0.353553385 : f32
    %31 = vector.broadcast %cst_17 : f32 to vector<8x8xf32>
    %32 = arith.mulf %30, %31 : vector<8x8xf32>
    %cst_18 = arith.constant dense<0xFF800000> : vector<8xf32>
    %33 = vector.multi_reduction <maximumf>, %32, %cst_18 [1] : vector<8x8xf32> to vector<8xf32>
    %34 = vector.shape_cast %33 : vector<8xf32> to vector<8x1xf32>
    %35 = vector.broadcast %34 : vector<8x1xf32> to vector<8x8xf32>
    %36 = arith.subf %32, %35 : vector<8x8xf32>
    %37 = math.exp %36 : vector<8x8xf32>
    %cst_19 = arith.constant dense<0.000000e+00> : vector<8xf32>
    %38 = vector.multi_reduction <add>, %37, %cst_19 [1] : vector<8x8xf32> to vector<8xf32>
    %39 = vector.shape_cast %38 : vector<8xf32> to vector<8x1xf32>
    %40 = tpu.reciprocal %39 : vector<8x1xf32> -> vector<8x1xf32>
    %41 = vector.broadcast %40 : vector<8x1xf32> to vector<8x8xf32>
    %42 = arith.mulf %37, %41 : vector<8x8xf32>
    %43 = arith.truncf %42 : vector<8x8xf32> to vector<8x8xbf16>
    %cst_20 = arith.constant dense<0.000000e+00> : vector<8x8xf32>
    %44 = tpu.matmul %43, %29, %cst_20 {dimension_numbers = #tpu.dot_dimension_numbers<[1], [0], [0], [1], [0, 0, 1, 1], [], []>} : vector<8x8xbf16>, vector<8x8xbf16>, vector<8x8xf32> -> vector<8x8xf32>
    %c0_21 = arith.constant 0 : index
    %c1 = arith.constant 1 : index
    %c0_22 = arith.constant 0 : index
    %c0_23 = arith.constant 0 : index
    %45 = vector.load %arg7[%c0_21, %c1, %c0_22, %c0_23] : memref<1x4x8x8xf32, #tpu.memory_space<vmem>>, vector<1x1x8x8xf32>
    %46 = vector.shape_cast %45 : vector<1x1x8x8xf32> to vector<8x8xf32>
    %47 = vector.shape_cast %42 : vector<8x8xf32> to vector<1x1x8x8xf32>
    tpu.vector_store %arg7[%c0_21, %c1, %c0_22, %c0_23], %47 {strides = array<i32>} : memref<1x4x8x8xf32, #tpu.memory_space<vmem>>, vector<1x1x8x8xf32>,
    %48 = vector.extract_strided_slice %1 {offsets = [0, 16], sizes = [8, 8], strides = [1, 1]} : vector<8x32xbf16> to vector<8x8xbf16>
    %49 = vector.extract_strided_slice %3 {offsets = [0, 16], sizes = [8, 8], strides = [1, 1]} : vector<8x32xbf16> to vector<8x8xbf16>
    %50 = vector.extract_strided_slice %5 {offsets = [0, 16], sizes = [8, 8], strides = [1, 1]} : vector<8x32xbf16> to vector<8x8xbf16>
    %cst_24 = arith.constant dense<0.000000e+00> : vector<8x8xf32>
    %51 = tpu.matmul %48, %49, %cst_24 {dimension_numbers = #tpu.dot_dimension_numbers<[1], [1], [0], [0], [0, 0, 1, 0], [], []>} : vector<8x8xbf16>, vector<8x8xbf16>, vector<8x8xf32> -> vector<8x8xf32>
    %cst_25 = arith.constant 0.353553385 : f32
    %52 = vector.broadcast %cst_25 : f32 to vector<8x8xf32>
    %53 = arith.mulf %51, %52 : vector<8x8xf32>
    %cst_26 = arith.constant dense<0xFF800000> : vector<8xf32>
    %54 = vector.multi_reduction <maximumf>, %53, %cst_26 [1] : vector<8x8xf32> to vector<8xf32>
    %55 = vector.shape_cast %54 : vector<8xf32> to vector<8x1xf32>
    %56 = vector.broadcast %55 : vector<8x1xf32> to vector<8x8xf32>
    %57 = arith.subf %53, %56 : vector<8x8xf32>
    %58 = math.exp %57 : vector<8x8xf32>
    %cst_27 = arith.constant dense<0.000000e+00> : vector<8xf32>
    %59 = vector.multi_reduction <add>, %58, %cst_27 [1] : vector<8x8xf32> to vector<8xf32>
    %60 = vector.shape_cast %59 : vector<8xf32> to vector<8x1xf32>
    %61 = tpu.reciprocal %60 : vector<8x1xf32> -> vector<8x1xf32>
    %62 = vector.broadcast %61 : vector<8x1xf32> to vector<8x8xf32>
    %63 = arith.mulf %58, %62 : vector<8x8xf32>
    %64 = arith.truncf %63 : vector<8x8xf32> to vector<8x8xbf16>
    %cst_28 = arith.constant dense<0.000000e+00> : vector<8x8xf32>
    %65 = tpu.matmul %64, %50, %cst_28 {dimension_numbers = #tpu.dot_dimension_numbers<[1], [0], [0], [1], [0, 0, 1, 1], [], []>} : vector<8x8xbf16>, vector<8x8xbf16>, vector<8x8xf32> -> vector<8x8xf32>
    %c0_29 = arith.constant 0 : index
    %c2 = arith.constant 2 : index
    %c0_30 = arith.constant 0 : index
    %c0_31 = arith.constant 0 : index
    %66 = vector.load %arg7[%c0_29, %c2, %c0_30, %c0_31] : memref<1x4x8x8xf32, #tpu.memory_space<vmem>>, vector<1x1x8x8xf32>
    %67 = vector.shape_cast %66 : vector<1x1x8x8xf32> to vector<8x8xf32>
    %68 = vector.shape_cast %63 : vector<8x8xf32> to vector<1x1x8x8xf32>
    tpu.vector_store %arg7[%c0_29, %c2, %c0_30, %c0_31], %68 {strides = array<i32>} : memref<1x4x8x8xf32, #tpu.memory_space<vmem>>, vector<1x1x8x8xf32>,
    %69 = vector.extract_strided_slice %1 {offsets = [0, 24], sizes = [8, 8], strides = [1, 1]} : vector<8x32xbf16> to vector<8x8xbf16>
    %70 = vector.extract_strided_slice %3 {offsets = [0, 24], sizes = [8, 8], strides = [1, 1]} : vector<8x32xbf16> to vector<8x8xbf16>
    %71 = vector.extract_strided_slice %5 {offsets = [0, 24], sizes = [8, 8], strides = [1, 1]} : vector<8x32xbf16> to vector<8x8xbf16>
    %cst_32 = arith.constant dense<0.000000e+00> : vector<8x8xf32>
    %72 = tpu.matmul %69, %70, %cst_32 {dimension_numbers = #tpu.dot_dimension_numbers<[1], [1], [0], [0], [0, 0, 1, 0], [], []>} : vector<8x8xbf16>, vector<8x8xbf16>, vector<8x8xf32> -> vector<8x8xf32>
    %cst_33 = arith.constant 0.353553385 : f32
    %73 = vector.broadcast %cst_33 : f32 to vector<8x8xf32>
    %74 = arith.mulf %72, %73 : vector<8x8xf32>
    %cst_34 = arith.constant dense<0xFF800000> : vector<8xf32>
    %75 = vector.multi_reduction <maximumf>, %74, %cst_34 [1] : vector<8x8xf32> to vector<8xf32>
    %76 = vector.shape_cast %75 : vector<8xf32> to vector<8x1xf32>
    %77 = vector.broadcast %76 : vector<8x1xf32> to vector<8x8xf32>
    %78 = arith.subf %74, %77 : vector<8x8xf32>
    %79 = math.exp %78 : vector<8x8xf32>
    %cst_35 = arith.constant dense<0.000000e+00> : vector<8xf32>
    %80 = vector.multi_reduction <add>, %79, %cst_35 [1] : vector<8x8xf32> to vector<8xf32>
    %81 = vector.shape_cast %80 : vector<8xf32> to vector<8x1xf32>
    %82 = tpu.reciprocal %81 : vector<8x1xf32> -> vector<8x1xf32>
    %83 = vector.broadcast %82 : vector<8x1xf32> to vector<8x8xf32>
    %84 = arith.mulf %79, %83 : vector<8x8xf32>
    %85 = arith.truncf %84 : vector<8x8xf32> to vector<8x8xbf16>
    %cst_36 = arith.constant dense<0.000000e+00> : vector<8x8xf32>
    %86 = tpu.matmul %85, %71, %cst_36 {dimension_numbers = #tpu.dot_dimension_numbers<[1], [0], [0], [1], [0, 0, 1, 1], [], []>} : vector<8x8xbf16>, vector<8x8xbf16>, vector<8x8xf32> -> vector<8x8xf32>
    %c0_37 = arith.constant 0 : index
    %c3 = arith.constant 3 : index
    %c0_38 = arith.constant 0 : index
    %c0_39 = arith.constant 0 : index
    %87 = vector.load %arg7[%c0_37, %c3, %c0_38, %c0_39] : memref<1x4x8x8xf32, #tpu.memory_space<vmem>>, vector<1x1x8x8xf32>
    %88 = vector.shape_cast %87 : vector<1x1x8x8xf32> to vector<8x8xf32>
    %89 = vector.shape_cast %84 : vector<8x8xf32> to vector<1x1x8x8xf32>
    tpu.vector_store %arg7[%c0_37, %c3, %c0_38, %c0_39], %89 {strides = array<i32>} : memref<1x4x8x8xf32, #tpu.memory_space<vmem>>, vector<1x1x8x8xf32>,
    %90 = tpu.concatenate %23, %44, %65, %86 in 1 : vector<8x8xf32>, vector<8x8xf32>, vector<8x8xf32>, vector<8x8xf32> -> vector<8x32xf32>
    %91 = arith.truncf %90 : vector<8x32xf32> to vector<8x32xbf16>
    %c0_40 = arith.constant 0 : index
    %c0_41 = arith.constant 0 : index
    %c0_42 = arith.constant 0 : index
    %92 = vector.load %arg6[%c0_40, %c0_41, %c0_42] : memref<1x8x32xbf16, #tpu.memory_space<vmem>>, vector<1x8x32xbf16>
    %93 = vector.shape_cast %92 : vector<1x8x32xbf16> to vector<8x32xbf16>
    %94 = vector.shape_cast %91 : vector<8x32xbf16> to vector<1x8x32xbf16>
    tpu.vector_store %arg6[%c0_40, %c0_41, %c0_42], %94 {strides = array<i32>} : memref<1x8x32xbf16, #tpu.memory_space<vmem>>, vector<1x8x32xbf16>,
    return
  }
  func.func @transform_0(%arg0: i32, %arg1: i32, %arg2: i32) -> (i32, i32, i32) {
    %c0_i32 = arith.constant 0 : i32
    return %arg0, %arg2, %arg1 : i32, i32, i32
  }
  func.func @transform_1(%arg0: i32, %arg1: i32, %arg2: i32) -> (i32, i32, i32) {
    %c0_i32 = arith.constant 0 : i32
    %c0_i32_0 = arith.constant 0 : i32
    return %arg0, %c0_i32, %arg1 : i32, i32, i32
  }
  func.func @transform_2(%arg0: i32, %arg1: i32, %arg2: i32) -> (i32, i32, i32) {
    %c0_i32 = arith.constant 0 : i32
    %c0_i32_0 = arith.constant 0 : i32
    return %arg0, %c0_i32, %arg1 : i32, i32, i32
  }
  func.func @transform_3(%arg0: i32, %arg1: i32, %arg2: i32) -> (i32, i32, i32) {
    %c0_i32 = arith.constant 0 : i32
    return %arg0, %arg2, %arg1 : i32, i32, i32
  }
  func.func @transform_4(%arg0: i32, %arg1: i32, %arg2: i32) -> (i32, i32, i32, i32) {
    %c0_i32 = arith.constant 0 : i32
    %c0_i32_0 = arith.constant 0 : i32
    return %arg0, %arg1, %arg2, %c0_i32 : i32, i32, i32, i32
  }
}

module attributes {stable_mosaic.version = 11 : i64} {
  func.func @_out_ffn_kernel(%arg0: i32, %arg1: memref<16x32xf32, #tpu.memory_space<vmem>>, %arg2: memref<16x32xbf16, #tpu.memory_space<vmem>>, %arg3: memref<32x32xbf16, #tpu.memory_space<vmem>>, %arg4: memref<1x32xf32, #tpu.memory_space<vmem>>, %arg5: memref<1x32xf32, #tpu.memory_space<vmem>>, %arg6: memref<1x32xf32, #tpu.memory_space<vmem>>, %arg7: memref<32x128xbf16, #tpu.memory_space<vmem>>, %arg8: memref<1x128xf32, #tpu.memory_space<vmem>>, %arg9: memref<128x32xbf16, #tpu.memory_space<vmem>>, %arg10: memref<1x32xf32, #tpu.memory_space<vmem>>, %arg11: memref<1x32xf32, #tpu.memory_space<vmem>>, %arg12: memref<1x32xf32, #tpu.memory_space<vmem>>, %arg13: memref<16x32xf32, #tpu.memory_space<vmem>>) attributes {dimension_semantics = [#tpu.dimension_semantics<parallel>], iteration_bounds = array<i64: 1>, scalar_prefetch = 0 : i64, scratch_operands = 0 : i64, tpu.core_type = #tpu.core_type<tc>, window_params = [{transform_indices = @transform_0, window_bounds = array<i64: 16, 32>}, {transform_indices = @transform_1, window_bounds = array<i64: 16, 32>}, {pipeline_mode = #tpu.pipeline_mode<synchronous>, transform_indices = @transform_2, window_bounds = array<i64: 32, 32>}, {pipeline_mode = #tpu.pipeline_mode<synchronous>, transform_indices = @transform_3, window_bounds = array<i64: 1, 32>}, {pipeline_mode = #tpu.pipeline_mode<synchronous>, transform_indices = @transform_4, window_bounds = array<i64: 1, 32>}, {pipeline_mode = #tpu.pipeline_mode<synchronous>, transform_indices = @transform_5, window_bounds = array<i64: 1, 32>}, {pipeline_mode = #tpu.pipeline_mode<synchronous>, transform_indices = @transform_6, window_bounds = array<i64: 32, 128>}, {pipeline_mode = #tpu.pipeline_mode<synchronous>, transform_indices = @transform_7, window_bounds = array<i64: 1, 128>}, {pipeline_mode = #tpu.pipeline_mode<synchronous>, transform_indices = @transform_8, window_bounds = array<i64: 128, 32>}, {pipeline_mode = #tpu.pipeline_mode<synchronous>, transform_indices = @transform_9, window_bounds = array<i64: 1, 32>}, {pipeline_mode = #tpu.pipeline_mode<synchronous>, transform_indices = @transform_10, window_bounds = array<i64: 1, 32>}, {pipeline_mode = #tpu.pipeline_mode<synchronous>, transform_indices = @transform_11, window_bounds = array<i64: 1, 32>}, {transform_indices = @transform_12, window_bounds = array<i64: 16, 32>}]} {
    %c0 = arith.constant 0 : index
    %c0_0 = arith.constant 0 : index
    %0 = vector.load %arg2[%c0, %c0_0] : memref<16x32xbf16, #tpu.memory_space<vmem>>, vector<16x32xbf16>
    %c0_1 = arith.constant 0 : index
    %c0_2 = arith.constant 0 : index
    %1 = vector.load %arg3[%c0_1, %c0_2] : memref<32x32xbf16, #tpu.memory_space<vmem>>, vector<32x32xbf16>
    %cst = arith.constant dense<0.000000e+00> : vector<16x32xf32>
    %2 = tpu.matmul %0, %1, %cst {dimension_numbers = #tpu.dot_dimension_numbers<[1], [0], [0], [1], [0, 0, 1, 1], [], []>} : vector<16x32xbf16>, vector<32x32xbf16>, vector<16x32xf32> -> vector<16x32xf32>
    %c0_3 = arith.constant 0 : index
    %c0_4 = arith.constant 0 : index
    %3 = vector.load %arg4[%c0_3, %c0_4] : memref<1x32xf32, #tpu.memory_space<vmem>>, vector<1x32xf32>
    %4 = vector.broadcast %3 : vector<1x32xf32> to vector<16x32xf32>
    %5 = arith.addf %2, %4 : vector<16x32xf32>
    %c0_5 = arith.constant 0 : index
    %c0_6 = arith.constant 0 : index
    %6 = vector.load %arg1[%c0_5, %c0_6] : memref<16x32xf32, #tpu.memory_space<vmem>>, vector<16x32xf32>
    %7 = arith.addf %6, %5 : vector<16x32xf32>
    %cst_7 = arith.constant dense<0.000000e+00> : vector<16xf32>
    %8 = vector.multi_reduction <add>, %7, %cst_7 [1] : vector<16x32xf32> to vector<16xf32>
    %9 = vector.shape_cast %8 : vector<16xf32> to vector<16x1xf32>
    %cst_8 = arith.constant 3.200000e+01 : f32
    %10 = vector.broadcast %cst_8 : f32 to vector<16x1xf32>
    %11 = arith.divf %9, %10 : vector<16x1xf32>
    %12 = vector.broadcast %11 : vector<16x1xf32> to vector<16x32xf32>
    %13 = arith.subf %7, %12 : vector<16x32xf32>
    %14 = arith.mulf %13, %13 : vector<16x32xf32>
    %cst_9 = arith.constant dense<0.000000e+00> : vector<16xf32>
    %15 = vector.multi_reduction <add>, %14, %cst_9 [1] : vector<16x32xf32> to vector<16xf32>
    %16 = vector.shape_cast %15 : vector<16xf32> to vector<16x1xf32>
    %cst_10 = arith.constant 3.200000e+01 : f32
    %17 = vector.broadcast %cst_10 : f32 to vector<16x1xf32>
    %18 = arith.divf %16, %17 : vector<16x1xf32>
    %19 = vector.broadcast %11 : vector<16x1xf32> to vector<16x32xf32>
    %20 = arith.subf %7, %19 : vector<16x32xf32>
    %cst_11 = arith.constant 9.99999974E-6 : f32
    %21 = vector.broadcast %cst_11 : f32 to vector<16x1xf32>
    %22 = arith.addf %18, %21 : vector<16x1xf32>
    %23 = math.rsqrt %22 : vector<16x1xf32>
    %24 = vector.broadcast %23 : vector<16x1xf32> to vector<16x32xf32>
    %25 = arith.mulf %20, %24 : vector<16x32xf32>
    %c0_12 = arith.constant 0 : index
    %c0_13 = arith.constant 0 : index
    %26 = vector.load %arg5[%c0_12, %c0_13] : memref<1x32xf32, #tpu.memory_space<vmem>>, vector<1x32xf32>
    %27 = vector.broadcast %26 : vector<1x32xf32> to vector<16x32xf32>
    %28 = arith.mulf %25, %27 : vector<16x32xf32>
    %c0_14 = arith.constant 0 : index
    %c0_15 = arith.constant 0 : index
    %29 = vector.load %arg6[%c0_14, %c0_15] : memref<1x32xf32, #tpu.memory_space<vmem>>, vector<1x32xf32>
    %30 = vector.broadcast %29 : vector<1x32xf32> to vector<16x32xf32>
    %31 = arith.addf %28, %30 : vector<16x32xf32>
    %32 = arith.truncf %31 : vector<16x32xf32> to vector<16x32xbf16>
    %cst_16 = arith.constant 0.000000e+00 : f32
    %33 = vector.broadcast %cst_16 : f32 to vector<16x32xf32>
    %c0_17 = arith.constant 0 : index
    %c0_18 = arith.constant 0 : index
    %34 = vector.load %arg7[%c0_17, %c0_18] : memref<32x128xbf16, #tpu.memory_space<vmem>>, vector<32x128xbf16>
    %cst_19 = arith.constant dense<0.000000e+00> : vector<16x128xf32>
    %35 = tpu.matmul %32, %34, %cst_19 {dimension_numbers = #tpu.dot_dimension_numbers<[1], [0], [0], [1], [0, 0, 1, 1], [], []>} : vector<16x32xbf16>, vector<32x128xbf16>, vector<16x128xf32> -> vector<16x128xf32>
    %c0_20 = arith.constant 0 : index
    %c0_21 = arith.constant 0 : index
    %36 = vector.load %arg8[%c0_20, %c0_21] : memref<1x128xf32, #tpu.memory_space<vmem>>, vector<1x128xf32>
    %37 = vector.broadcast %36 : vector<1x128xf32> to vector<16x128xf32>
    %38 = arith.addf %35, %37 : vector<16x128xf32>
    %cst_22 = arith.constant 0.000000e+00 : f32
    %39 = vector.broadcast %cst_22 : f32 to vector<16x128xf32>
    %40 = arith.maximumf %38, %39 : vector<16x128xf32>
    %41 = arith.truncf %40 : vector<16x128xf32> to vector<16x128xbf16>
    %c0_23 = arith.constant 0 : index
    %c0_24 = arith.constant 0 : index
    %42 = vector.load %arg9[%c0_23, %c0_24] : memref<128x32xbf16, #tpu.memory_space<vmem>>, vector<128x32xbf16>
    %cst_25 = arith.constant dense<0.000000e+00> : vector<16x32xf32>
    %43 = tpu.matmul %41, %42, %cst_25 {dimension_numbers = #tpu.dot_dimension_numbers<[1], [0], [0], [1], [0, 0, 1, 1], [], []>} : vector<16x128xbf16>, vector<128x32xbf16>, vector<16x32xf32> -> vector<16x32xf32>
    %44 = arith.addf %33, %43 : vector<16x32xf32>
    %c0_26 = arith.constant 0 : index
    %c0_27 = arith.constant 0 : index
    %45 = vector.load %arg10[%c0_26, %c0_27] : memref<1x32xf32, #tpu.memory_space<vmem>>, vector<1x32xf32>
    %46 = vector.broadcast %45 : vector<1x32xf32> to vector<16x32xf32>
    %47 = arith.addf %44, %46 : vector<16x32xf32>
    %48 = arith.addf %31, %47 : vector<16x32xf32>
    %cst_28 = arith.constant dense<0.000000e+00> : vector<16xf32>
    %49 = vector.multi_reduction <add>, %48, %cst_28 [1] : vector<16x32xf32> to vector<16xf32>
    %50 = vector.shape_cast %49 : vector<16xf32> to vector<16x1xf32>
    %cst_29 = arith.constant 3.200000e+01 : f32
    %51 = vector.broadcast %cst_29 : f32 to vector<16x1xf32>
    %52 = arith.divf %50, %51 : vector<16x1xf32>
    %53 = vector.broadcast %52 : vector<16x1xf32> to vector<16x32xf32>
    %54 = arith.subf %48, %53 : vector<16x32xf32>
    %55 = arith.mulf %54, %54 : vector<16x32xf32>
    %cst_30 = arith.constant dense<0.000000e+00> : vector<16xf32>
    %56 = vector.multi_reduction <add>, %55, %cst_30 [1] : vector<16x32xf32> to vector<16xf32>
    %57 = vector.shape_cast %56 : vector<16xf32> to vector<16x1xf32>
    %cst_31 = arith.constant 3.200000e+01 : f32
    %58 = vector.broadcast %cst_31 : f32 to vector<16x1xf32>
    %59 = arith.divf %57, %58 : vector<16x1xf32>
    %60 = vector.broadcast %52 : vector<16x1xf32> to vector<16x32xf32>
    %61 = arith.subf %48, %60 : vector<16x32xf32>
    %cst_32 = arith.constant 9.99999974E-6 : f32
    %62 = vector.broadcast %cst_32 : f32 to vector<16x1xf32>
    %63 = arith.addf %59, %62 : vector<16x1xf32>
    %64 = math.rsqrt %63 : vector<16x1xf32>
    %65 = vector.broadcast %64 : vector<16x1xf32> to vector<16x32xf32>
    %66 = arith.mulf %61, %65 : vector<16x32xf32>
    %c0_33 = arith.constant 0 : index
    %c0_34 = arith.constant 0 : index
    %67 = vector.load %arg11[%c0_33, %c0_34] : memref<1x32xf32, #tpu.memory_space<vmem>>, vector<1x32xf32>
    %68 = vector.broadcast %67 : vector<1x32xf32> to vector<16x32xf32>
    %69 = arith.mulf %66, %68 : vector<16x32xf32>
    %c0_35 = arith.constant 0 : index
    %c0_36 = arith.constant 0 : index
    %70 = vector.load %arg12[%c0_35, %c0_36] : memref<1x32xf32, #tpu.memory_space<vmem>>, vector<1x32xf32>
    %71 = vector.broadcast %70 : vector<1x32xf32> to vector<16x32xf32>
    %72 = arith.addf %69, %71 : vector<16x32xf32>
    %c0_37 = arith.constant 0 : index
    %c0_38 = arith.constant 0 : index
    %73 = vector.load %arg13[%c0_37, %c0_38] : memref<16x32xf32, #tpu.memory_space<vmem>>, vector<16x32xf32>
    tpu.vector_store %arg13[%c0_37, %c0_38], %72 {strides = array<i32>} : memref<16x32xf32, #tpu.memory_space<vmem>>, vector<16x32xf32>,
    return
  }
  func.func @transform_0(%arg0: i32) -> (i32, i32) {
    %c0_i32 = arith.constant 0 : i32
    %c0_i32_0 = arith.constant 0 : i32
    return %arg0, %c0_i32 : i32, i32
  }
  func.func @transform_1(%arg0: i32) -> (i32, i32) {
    %c0_i32 = arith.constant 0 : i32
    %c0_i32_0 = arith.constant 0 : i32
    return %arg0, %c0_i32 : i32, i32
  }
  func.func @transform_2(%arg0: i32) -> (i32, i32) {
    %c0_i32 = arith.constant 0 : i32
    %c0_i32_0 = arith.constant 0 : i32
    %c0_i32_1 = arith.constant 0 : i32
    return %c0_i32, %c0_i32_0 : i32, i32
  }
  func.func @transform_3(%arg0: i32) -> (i32, i32) {
    %c0_i32 = arith.constant 0 : i32
    %c0_i32_0 = arith.constant 0 : i32
    %c0_i32_1 = arith.constant 0 : i32
    return %c0_i32, %c0_i32_0 : i32, i32
  }
  func.func @transform_4(%arg0: i32) -> (i32, i32) {
    %c0_i32 = arith.constant 0 : i32
    %c0_i32_0 = arith.constant 0 : i32
    %c0_i32_1 = arith.constant 0 : i32
    return %c0_i32, %c0_i32_0 : i32, i32
  }
  func.func @transform_5(%arg0: i32) -> (i32, i32) {
    %c0_i32 = arith.constant 0 : i32
    %c0_i32_0 = arith.constant 0 : i32
    %c0_i32_1 = arith.constant 0 : i32
    return %c0_i32, %c0_i32_0 : i32, i32
  }
  func.func @transform_6(%arg0: i32) -> (i32, i32) {
    %c0_i32 = arith.constant 0 : i32
    %c0_i32_0 = arith.constant 0 : i32
    %c0_i32_1 = arith.constant 0 : i32
    return %c0_i32, %c0_i32_0 : i32, i32
  }
  func.func @transform_7(%arg0: i32) -> (i32, i32) {
    %c0_i32 = arith.constant 0 : i32
    %c0_i32_0 = arith.constant 0 : i32
    %c0_i32_1 = arith.constant 0 : i32
    return %c0_i32, %c0_i32_0 : i32, i32
  }
  func.func @transform_8(%arg0: i32) -> (i32, i32) {
    %c0_i32 = arith.constant 0 : i32
    %c0_i32_0 = arith.constant 0 : i32
    %c0_i32_1 = arith.constant 0 : i32
    return %c0_i32, %c0_i32_0 : i32, i32
  }
  func.func @transform_9(%arg0: i32) -> (i32, i32) {
    %c0_i32 = arith.constant 0 : i32
    %c0_i32_0 = arith.constant 0 : i32
    %c0_i32_1 = arith.constant 0 : i32
    return %c0_i32, %c0_i32_0 : i32, i32
  }
  func.func @transform_10(%arg0: i32) -> (i32, i32) {
    %c0_i32 = arith.constant 0 : i32
    %c0_i32_0 = arith.constant 0 : i32
    %c0_i32_1 = arith.constant 0 : i32
    return %c0_i32, %c0_i32_0 : i32, i32
  }
  func.func @transform_11(%arg0: i32) -> (i32, i32) {
    %c0_i32 = arith.constant 0 : i32
    %c0_i32_0 = arith.constant 0 : i32
    %c0_i32_1 = arith.constant 0 : i32
    return %c0_i32, %c0_i32_0 : i32, i32
  }
  func.func @transform_12(%arg0: i32) -> (i32, i32) {
    %c0_i32 = arith.constant 0 : i32
    %c0_i32_0 = arith.constant 0 : i32
    return %arg0, %c0_i32 : i32, i32
  }
}

</mosaic_0001>

<llo_original>
// kernel: encoder_layer.3
$region0: #{encoder_layer.3}
  #allocation0 [shape = 'u32[]', space=smem, size = 0x4, offset = 0x4, fixed_abs, tag = 'smem constant byte address 0x4 - core index']
  #allocation1 [shape = 'u32[144,128]{1,0:T(1,128)}', space=vmem, size = 0x12000, scoped, tag = 'internal scratch']
  %s0 = inlined_call_operand.hbm [shape: f32[16,32], index: 0, kind: input, shape index: {}]
  %s1 = inlined_call_operand.vmem [shape: bf16[32,32], index: 1, kind: input, shape index: {}]
  %s2 = inlined_call_operand.vmem [shape: f32[1,32], index: 2, kind: input, shape index: {}]
  %s3 = inlined_call_operand.vmem [shape: bf16[32,32], index: 3, kind: input, shape index: {}]
  %s4 = inlined_call_operand.hbm [shape: f32[1,32], index: 4, kind: input, shape index: {}]
  %s5 = inlined_call_operand.vmem [shape: bf16[32,32], index: 5, kind: input, shape index: {}]
  %s6 = inlined_call_operand.hbm [shape: f32[1,32], index: 6, kind: input, shape index: {}]
  %s7 = inlined_call_operand.vmem [shape: bf16[16,32], index: 7, kind: output, shape index: {0}]
  %s8 = inlined_call_operand.vmem [shape: bf16[16,32], index: 8, kind: output, shape index: {1}]
  %s9 = inlined_call_operand.vmem [shape: bf16[16,32], index: 9, kind: output, shape index: {2}]
  %10 = xla_tuple %s7, %s8, %s9
  %s11 = sld [smem:[#allocation0]]
  $region66: #{encoder_layer.3} parent=0
    _
  %s13 = ssub.s32 1, %s11
  %s14 = scalar_select 0, %s13, %s11
  $region1: #{encoder_layer.3} parent=0
    #allocation2 [shape = 'u8[8192]{0}', space=vmem, size = 0x2000, scoped, tag = 'input window, operand 0, single buffered']
    #allocation3 [shape = 's32[1]{0}', space=sflag, size = 0x4, scoped, tag = 'scoped memory for encoder_layer.3']
    #allocation4 [shape = 'u8[512]{0}', space=vmem, size = 0x400, scoped, tag = 'input window, operand 4, single buffered']
    #allocation5 [shape = 's32[1]{0}', space=sflag, size = 0x4, scoped, tag = 'scoped memory for encoder_layer.3']
    #allocation6 [shape = 'u8[512]{0}', space=vmem, size = 0x400, scoped, tag = 'input window, operand 6, single buffered']
    %15 = vsyncpa [#allocation3], 0
    %16 = vsyncpa [#allocation5], 0
    // Predicated region
    $region2: #{encoder_layer.3} parent=1 // pred_check
      _
    $region3: #{encoder_layer.3} parent=1 // pred_check_branch
      %18 = sbr.rel (0) target = $region5
    $region4: #{encoder_layer.3} parent=1 // pred_region
      %s20 = ssub.s32 256, 256
      %21 = vsyncadd [#allocation3], %s20
      %s22 = sshll.u32 [#allocation2], 4
      %s23 = int_to_ptr.vmem [resolvable:$true] %s22
      %28 = dma.hbm_to_vmem [thread:$0]  %s0, 256, %s23, [#allocation3], 128, 128, 8
    $region5: #{encoder_layer.3} parent=1 // pred_fallthru
      _
    // Predicated region
    $region6: #{encoder_layer.3} parent=1 // pred_check
      _
    $region7: #{encoder_layer.3} parent=1 // pred_check_branch
      %30 = sbr.rel (0) target = $region9
    $region8: #{encoder_layer.3} parent=1 // pred_region
      _
    $region9: #{encoder_layer.3} parent=1 // pred_fallthru
      _
    // Predicated region
    $region10: #{encoder_layer.3} parent=1 // pred_check
      _
    $region11: #{encoder_layer.3} parent=1 // pred_check_branch
      %32 = sbr.rel (0) target = $region13
    $region12: #{encoder_layer.3} parent=1 // pred_region
      _
    $region13: #{encoder_layer.3} parent=1 // pred_fallthru
      _
    // Predicated region
    $region14: #{encoder_layer.3} parent=1 // pred_check
      _
    $region15: #{encoder_layer.3} parent=1 // pred_check_branch
      %34 = sbr.rel (0) target = $region17
    $region16: #{encoder_layer.3} parent=1 // pred_region
      _
    $region17: #{encoder_layer.3} parent=1 // pred_fallthru
      _
    // Predicated region
    $region18: #{encoder_layer.3} parent=1 // pred_check
      _
    $region19: #{encoder_layer.3} parent=1 // pred_check_branch
      %36 = sbr.rel (0) target = $region21
    $region20: #{encoder_layer.3} parent=1 // pred_region
      %s38 = ssub.s32 16, 16
      %39 = vsyncadd [#allocation5], %s38
      %s41 = sshll.u32 [#allocation4], 4
      %s42 = int_to_ptr.vmem [resolvable:$true] %s41
      %44 = dma.hbm_to_vmem [thread:$0]  %s4, 16, %s42, [#allocation5]
    $region21: #{encoder_layer.3} parent=1 // pred_fallthru
      _
    // Predicated region
    $region22: #{encoder_layer.3} parent=1 // pred_check
      _
    $region23: #{encoder_layer.3} parent=1 // pred_check_branch
      %46 = sbr.rel (0) target = $region25
    $region24: #{encoder_layer.3} parent=1 // pred_region
      _
    $region25: #{encoder_layer.3} parent=1 // pred_fallthru
      _
    // Predicated region
    $region26: #{encoder_layer.3} parent=1 // pred_check
      _
    $region27: #{encoder_layer.3} parent=1 // pred_check_branch
      %48 = sbr.rel (0) target = $region29
    $region28: #{encoder_layer.3} parent=1 // pred_region
      %s50 = ssub.s32 16, 16
      %51 = vsyncadd [#allocation5], %s50
      %s53 = sshll.u32 [#allocation6], 4
      %s54 = int_to_ptr.vmem [resolvable:$true] %s53
      %56 = dma.hbm_to_vmem [thread:$0]  %s6, 16, %s54, [#allocation5]
    $region29: #{encoder_layer.3} parent=1 // pred_fallthru
      _
    // Predicated region
    $region30: #{encoder_layer.3} parent=1 // pred_check
      _
    $region31: #{encoder_layer.3} parent=1 // pred_check_branch
      %58 = sbr.rel (0) target = $region33
    $region32: #{encoder_layer.3} parent=1 // pred_region
      %59 = dma.done [#allocation3], 256
    $region33: #{encoder_layer.3} parent=1 // pred_fallthru
      _
    // Predicated region
    $region34: #{encoder_layer.3} parent=1 // pred_check
      _
    $region35: #{encoder_layer.3} parent=1 // pred_check_branch
      %61 = sbr.rel (0) target = $region37
    $region36: #{encoder_layer.3} parent=1 // pred_region
      %62 = dma.done [#allocation5], 16
    $region37: #{encoder_layer.3} parent=1 // pred_fallthru
      _
    // Predicated region
    $region38: #{encoder_layer.3} parent=1 // pred_check
      _
    $region39: #{encoder_layer.3} parent=1 // pred_check_branch
      %64 = sbr.rel (0) target = $region41
    $region40: #{encoder_layer.3} parent=1 // pred_region
      %65 = dma.done [#allocation5], 16
    $region41: #{encoder_layer.3} parent=1 // pred_fallthru
      _
    %v67 = vld [vmem:[#allocation2] sm:$0xff]
    %v68 = vld [vmem:[#allocation2 + $0x8] sm:$0xff]
    %v69 = vpack.c.bf16 %v68, %v67
    %v70 = vld [vmem:[%s1] sm:$0xf]
    %v71 = vld [vmem:[%s1 + $0x4] sm:$0xf]
    %v72 = vld [vmem:[%s1 + $0x8] sm:$0xf]
    %v73 = vld [vmem:[%s1 + $0xc] sm:$0xf]
    %v74 = vld [vmem:[%s2] sm:$0x1]
    %v76 = vlaneseq
    %v77 = vshrl.u32 %v76, 7
    %v78 = vsub.s32 0, %v77
    %v79 = vrot.slane %v74, %v78
    %v85 = vunpack.c.l.b16 %v70
    %v86 = vunpack.c.l.b16 %v71
    %v87 = vunpack.c.l.b16 %v72
    %v88 = vunpack.c.l.b16 %v73
    %v89 = vpack.c.b16 %v86, %v85
    %v90 = vpack.c.b16 %v88, %v87
    %vm93 = vcmask 261120
    %v95 = vsel %vm93, %v69, 0
    %97 = vmatprep.subr.bf16.mxu0 0
    %98 = vmatpush1.bf16.msra.mxu0 %v89
    %99 = vmatprep.subr.bf16.mxu0 0
    %100 = vmatpush1.bf16.msra.mxu0 %v90
    %101 = vmatprep.subr.bf16.mxu0 0
    %102 = vmatpush1.bf16.msra.mxu0 0
    %103 = vmatprep.subr.bf16.mxu0 0
    %104 = vmatpush1.bf16.msra.mxu0 0
    %105 = vmatprep.subr.bf16.mxu0 0
    %106 = vmatpush1.bf16.msra.mxu0 0
    %107 = vmatprep.subr.bf16.mxu0 0
    %108 = vmatpush1.bf16.msra.mxu0 0
    %109 = vmatprep.subr.bf16.mxu0 0
    %110 = vmatpush1.bf16.msra.mxu0 0
    %111 = vmatprep.subr.bf16.mxu0 0
    %112 = vmatpush1.bf16.msra.mxu0 0
    %113 = vmatprep.subr.bf16.mxu0 0
    %114 = vmatpush1.bf16.msra.mxu0 0
    %115 = vmatprep.subr.bf16.mxu0 0
    %116 = vmatpush1.bf16.msra.mxu0 0
    %117 = vmatprep.subr.bf16.mxu0 0
    %118 = vmatpush1.bf16.msra.mxu0 0
    %119 = vmatprep.subr.bf16.mxu0 0
    %120 = vmatpush1.bf16.msra.mxu0 0
    %121 = vmatprep.subr.bf16.mxu0 0
    %122 = vmatpush1.bf16.msra.mxu0 0
    %123 = vmatprep.subr.bf16.mxu0 0
    %124 = vmatpush1.bf16.msra.mxu0 0
    %125 = vmatprep.subr.bf16.mxu0 0
    %126 = vmatpush1.bf16.msra.mxu0 0
    %127 = vmatprep.subr.bf16.mxu0 0
    %128 = vmatpush1.bf16.msra.mxu0 0
    %129 = vmatprep.mubr.bf16.mxu0 0
    %130 = vmatmul.mubr.bf16.gmra.mrb[0].mxu0 %v95
    %v131 = vpop.f32.mrb[0].mxu0
    %v132 = vadd.f32 %v79, %v131
    %v133 = vpop.f32.mrb[0].mxu0
    %v134 = vpop.f32.mrb[0].mxu0
    %v135 = vadd.f32 %v79, %v134
    %v136 = vpop.f32.mrb[0].mxu0
    %137 = vdwg.mxu0
    %v138 = vpack.c.bf16 %v135, %v132
    %v140 = vunpack.c.l.b16 %v138
    %v141 = vunpack.c.h.b16 %v138
    %v142 = vpack.c.b16 %v140, %v140
    %v143 = vpack.c.b16 %v141, %v141
    %vm146 = vcmask 257024
    %147 = vst.msk [vmem:[%s7] sm:$0xf] %vm146, %v142
    %148 = vst.msk [vmem:[%s7 + $0x4] sm:$0xf] %vm146, %v143
    %v149 = vld [vmem:[%s3] sm:$0xf]
    %v150 = vld [vmem:[%s3 + $0x4] sm:$0xf]
    %v151 = vld [vmem:[%s3 + $0x8] sm:$0xf]
    %v152 = vld [vmem:[%s3 + $0xc] sm:$0xf]
    %v153 = vld [vmem:[#allocation4] sm:$0x1]
    %v155 = vlaneseq
    %v156 = vshrl.u32 %v155, 7
    %v157 = vsub.s32 0, %v156
    %v158 = vrot.slane %v153, %v157
    %v164 = vunpack.c.l.b16 %v149
    %v165 = vunpack.c.l.b16 %v150
    %v166 = vunpack.c.l.b16 %v151
    %v167 = vunpack.c.l.b16 %v152
    %v168 = vpack.c.b16 %v165, %v164
    %v169 = vpack.c.b16 %v167, %v166
    %172 = vmatprep.subr.bf16.mxu0 0
    %173 = vmatpush1.bf16.msra.mxu0 %v168
    %174 = vmatprep.subr.bf16.mxu0 0
    %175 = vmatpush1.bf16.msra.mxu0 %v169
    %176 = vmatprep.subr.bf16.mxu0 0
    %177 = vmatpush1.bf16.msra.mxu0 0
    %178 = vmatprep.subr.bf16.mxu0 0
    %179 = vmatpush1.bf16.msra.mxu0 0
    %180 = vmatprep.subr.bf16.mxu0 0
    %181 = vmatpush1.bf16.msra.mxu0 0
    %182 = vmatprep.subr.bf16.mxu0 0
    %183 = vmatpush1.bf16.msra.mxu0 0
    %184 = vmatprep.subr.bf16.mxu0 0
    %185 = vmatpush1.bf16.msra.mxu0 0
    %186 = vmatprep.subr.bf16.mxu0 0
    %187 = vmatpush1.bf16.msra.mxu0 0
    %188 = vmatprep.subr.bf16.mxu0 0
    %189 = vmatpush1.bf16.msra.mxu0 0
    %190 = vmatprep.subr.bf16.mxu0 0
    %191 = vmatpush1.bf16.msra.mxu0 0
    %192 = vmatprep.subr.bf16.mxu0 0
    %193 = vmatpush1.bf16.msra.mxu0 0
    %194 = vmatprep.subr.bf16.mxu0 0
    %195 = vmatpush1.bf16.msra.mxu0 0
    %196 = vmatprep.subr.bf16.mxu0 0
    %197 = vmatpush1.bf16.msra.mxu0 0
    %198 = vmatprep.subr.bf16.mxu0 0
    %199 = vmatpush1.bf16.msra.mxu0 0
    %200 = vmatprep.subr.bf16.mxu0 0
    %201 = vmatpush1.bf16.msra.mxu0 0
    %202 = vmatprep.subr.bf16.mxu0 0
    %203 = vmatpush1.bf16.msra.mxu0 0
    %204 = vmatprep.mubr.bf16.mxu0 0
    %205 = vmatmul.mubr.bf16.gmra.mrb[0].mxu0 %v95
    %v206 = vpop.f32.mrb[0].mxu0
    %v207 = vadd.f32 %v158, %v206
    %v208 = vpop.f32.mrb[0].mxu0
    %v209 = vpop.f32.mrb[0].mxu0
    %v210 = vadd.f32 %v158, %v209
    %v211 = vpop.f32.mrb[0].mxu0
    %212 = vdwg.mxu0
    %v213 = vpack.c.bf16 %v210, %v207
    %v215 = vunpack.c.l.b16 %v213
    %v216 = vunpack.c.h.b16 %v213
    %v217 = vpack.c.b16 %v215, %v215
    %v218 = vpack.c.b16 %v216, %v216
    %221 = vst.msk [vmem:[%s8] sm:$0xf] %vm146, %v217
    %222 = vst.msk [vmem:[%s8 + $0x4] sm:$0xf] %vm146, %v218
    %v223 = vld [vmem:[%s5] sm:$0xf]
    %v224 = vld [vmem:[%s5 + $0x4] sm:$0xf]
    %v225 = vld [vmem:[%s5 + $0x8] sm:$0xf]
    %v226 = vld [vmem:[%s5 + $0xc] sm:$0xf]
    %v227 = vld [vmem:[#allocation6] sm:$0x1]
    %v229 = vlaneseq
    %v230 = vshrl.u32 %v229, 7
    %v231 = vsub.s32 0, %v230
    %v232 = vrot.slane %v227, %v231
    %v238 = vunpack.c.l.b16 %v223
    %v239 = vunpack.c.l.b16 %v224
    %v240 = vunpack.c.l.b16 %v225
    %v241 = vunpack.c.l.b16 %v226
    %v242 = vpack.c.b16 %v239, %v238
    %v243 = vpack.c.b16 %v241, %v240
    %246 = vmatprep.subr.bf16.mxu0 0
    %247 = vmatpush1.bf16.msra.mxu0 %v242
    %248 = vmatprep.subr.bf16.mxu0 0
    %249 = vmatpush1.bf16.msra.mxu0 %v243
    %250 = vmatprep.subr.bf16.mxu0 0
    %251 = vmatpush1.bf16.msra.mxu0 0
    %252 = vmatprep.subr.bf16.mxu0 0
    %253 = vmatpush1.bf16.msra.mxu0 0
    %254 = vmatprep.subr.bf16.mxu0 0
    %255 = vmatpush1.bf16.msra.mxu0 0
    %256 = vmatprep.subr.bf16.mxu0 0
    %257 = vmatpush1.bf16.msra.mxu0 0
    %258 = vmatprep.subr.bf16.mxu0 0
    %259 = vmatpush1.bf16.msra.mxu0 0
    %260 = vmatprep.subr.bf16.mxu0 0
    %261 = vmatpush1.bf16.msra.mxu0 0
    %262 = vmatprep.subr.bf16.mxu0 0
    %263 = vmatpush1.bf16.msra.mxu0 0
    %264 = vmatprep.subr.bf16.mxu0 0
    %265 = vmatpush1.bf16.msra.mxu0 0
    %266 = vmatprep.subr.bf16.mxu0 0
    %267 = vmatpush1.bf16.msra.mxu0 0
    %268 = vmatprep.subr.bf16.mxu0 0
    %269 = vmatpush1.bf16.msra.mxu0 0
    %270 = vmatprep.subr.bf16.mxu0 0
    %271 = vmatpush1.bf16.msra.mxu0 0
    %272 = vmatprep.subr.bf16.mxu0 0
    %273 = vmatpush1.bf16.msra.mxu0 0
    %274 = vmatprep.subr.bf16.mxu0 0
    %275 = vmatpush1.bf16.msra.mxu0 0
    %276 = vmatprep.subr.bf16.mxu0 0
    %277 = vmatpush1.bf16.msra.mxu0 0
    %278 = vmatprep.mubr.bf16.mxu0 0
    %279 = vmatmul.mubr.bf16.gmra.mrb[0].mxu0 %v95
    %v280 = vpop.f32.mrb[0].mxu0
    %v281 = vadd.f32 %v232, %v280
    %v282 = vpop.f32.mrb[0].mxu0
    %v283 = vpop.f32.mrb[0].mxu0
    %v284 = vadd.f32 %v232, %v283
    %v285 = vpop.f32.mrb[0].mxu0
    %286 = vdwg.mxu0
    %v287 = vpack.c.bf16 %v284, %v281
    %v289 = vunpack.c.l.b16 %v287
    %v290 = vunpack.c.h.b16 %v287
    %v291 = vpack.c.b16 %v289, %v289
    %v292 = vpack.c.b16 %v290, %v290
    %295 = vst.msk [vmem:[%s9] sm:$0xf] %vm146, %v291
    %296 = vst.msk [vmem:[%s9 + $0x4] sm:$0xf] %vm146, %v292
    // Predicated region
    $region42: #{encoder_layer.3} parent=1 // pred_check
      _
    $region43: #{encoder_layer.3} parent=1 // pred_check_branch
      %298 = sbr.rel (0) target = $region45
    $region44: #{encoder_layer.3} parent=1 // pred_region
      _
    $region45: #{encoder_layer.3} parent=1 // pred_fallthru
      _
    // Predicated region
    $region46: #{encoder_layer.3} parent=1 // pred_check
      _
    $region47: #{encoder_layer.3} parent=1 // pred_check_branch
      %300 = sbr.rel (0) target = $region49
    $region48: #{encoder_layer.3} parent=1 // pred_region
      _
    $region49: #{encoder_layer.3} parent=1 // pred_fallthru
      _
    // Predicated region
    $region50: #{encoder_layer.3} parent=1 // pred_check
      _
    $region51: #{encoder_layer.3} parent=1 // pred_check_branch
      %302 = sbr.rel (0) target = $region53
    $region52: #{encoder_layer.3} parent=1 // pred_region
      _
    $region53: #{encoder_layer.3} parent=1 // pred_fallthru
      _
    // Predicated region
    $region54: #{encoder_layer.3} parent=1 // pred_check
      _
    $region55: #{encoder_layer.3} parent=1 // pred_check_branch
      %304 = sbr.rel (0) target = $region57
    $region56: #{encoder_layer.3} parent=1 // pred_region
      _
    $region57: #{encoder_layer.3} parent=1 // pred_fallthru
      _
    // Predicated region
    $region58: #{encoder_layer.3} parent=1 // pred_check
      _
    $region59: #{encoder_layer.3} parent=1 // pred_check_branch
      %306 = sbr.rel (0) target = $region61
    $region60: #{encoder_layer.3} parent=1 // pred_region
      _
    $region61: #{encoder_layer.3} parent=1 // pred_fallthru
      _
    // Predicated region
    $region62: #{encoder_layer.3} parent=1 // pred_check
      _
    $region63: #{encoder_layer.3} parent=1 // pred_check_branch
      %308 = sbr.rel (0) target = $region65
    $region64: #{encoder_layer.3} parent=1 // pred_region
      _
    $region65: #{encoder_layer.3} parent=1 // pred_fallthru
      _
    %309 = vsyncpa [#allocation3], 1
    %310 = vsyncpa [#allocation5], 1

// kernel: encoder_layer.5
$region0: #{encoder_layer.5}
  #allocation0 [shape = 'u32[]', space=smem, size = 0x4, offset = 0x4, fixed_abs, tag = 'smem constant byte address 0x4 - core index']
  #allocation1 [shape = 'u32[144,128]{1,0:T(1,128)}', space=vmem, size = 0x12000, scoped, tag = 'internal scratch']
  %s0 = inlined_call_operand.vmem [shape: f32[16,32], index: 0, kind: input, shape index: {}]
  %s1 = inlined_call_operand.vmem [shape: bf16[16,32], index: 1, kind: input, shape index: {}]
  %s2 = inlined_call_operand.vmem [shape: bf16[32,32], index: 2, kind: input, shape index: {}]
  %s3 = inlined_call_operand.vmem [shape: f32[1,32], index: 3, kind: input, shape index: {}]
  %s4 = inlined_call_operand.vmem [shape: f32[1,32], index: 4, kind: input, shape index: {}]
  %s5 = inlined_call_operand.vmem [shape: f32[1,32], index: 5, kind: input, shape index: {}]
  %s6 = inlined_call_operand.vmem [shape: bf16[32,128], index: 6, kind: input, shape index: {}]
  %s7 = inlined_call_operand.vmem [shape: f32[1,128], index: 7, kind: input, shape index: {}]
  %s8 = inlined_call_operand.vmem [shape: bf16[128,32], index: 8, kind: input, shape index: {}]
  %s9 = inlined_call_operand.vmem [shape: f32[1,32], index: 9, kind: input, shape index: {}]
  %s10 = inlined_call_operand.vmem [shape: f32[1,32], index: 10, kind: input, shape index: {}]
  %s11 = inlined_call_operand.vmem [shape: f32[1,32], index: 11, kind: input, shape index: {}]
  %s12 = inlined_call_operand.hbm [shape: f32[16,32], index: 12, kind: output, shape index: {}]
  %s13 = sld [smem:[#allocation0]]
  $region58: #{encoder_layer.5} parent=0
    _
  %s15 = ssub.s32 1, %s13
  %s16 = scalar_select 0, %s15, %s13
  $region1: #{encoder_layer.5} parent=0
    #allocation2 [shape = 'u8[8192]{0}', space=vmem, size = 0x2000, scoped, tag = 'output window, operand 0, single buffered']
    #allocation3 [shape = 's32[1]{0}', space=sflag, size = 0x4, scoped, tag = 'scoped memory for encoder_layer.5']
    %17 = vsyncpa [#allocation3], 0
    // Predicated region
    $region2: #{encoder_layer.5} parent=1 // pred_check
      _
    $region3: #{encoder_layer.5} parent=1 // pred_check_branch
      %19 = sbr.rel (0) target = $region5
    $region4: #{encoder_layer.5} parent=1 // pred_region
      _
    $region5: #{encoder_layer.5} parent=1 // pred_fallthru
      _
    // Predicated region
    $region6: #{encoder_layer.5} parent=1 // pred_check
      _
    $region7: #{encoder_layer.5} parent=1 // pred_check_branch
      %21 = sbr.rel (0) target = $region9
    $region8: #{encoder_layer.5} parent=1 // pred_region
      _
    $region9: #{encoder_layer.5} parent=1 // pred_fallthru
      _
    // Predicated region
    $region10: #{encoder_layer.5} parent=1 // pred_check
      _
    $region11: #{encoder_layer.5} parent=1 // pred_check_branch
      %23 = sbr.rel (0) target = $region13
    $region12: #{encoder_layer.5} parent=1 // pred_region
      _
    $region13: #{encoder_layer.5} parent=1 // pred_fallthru
      _
    // Predicated region
    $region14: #{encoder_layer.5} parent=1 // pred_check
      _
    $region15: #{encoder_layer.5} parent=1 // pred_check_branch
      %25 = sbr.rel (0) target = $region17
    $region16: #{encoder_layer.5} parent=1 // pred_region
      _
    $region17: #{encoder_layer.5} parent=1 // pred_fallthru
      _
    // Predicated region
    $region18: #{encoder_layer.5} parent=1 // pred_check
      _
    $region19: #{encoder_layer.5} parent=1 // pred_check_branch
      %27 = sbr.rel (0) target = $region21
    $region20: #{encoder_layer.5} parent=1 // pred_region
      _
    $region21: #{encoder_layer.5} parent=1 // pred_fallthru
      _
    // Predicated region
    $region22: #{encoder_layer.5} parent=1 // pred_check
      _
    $region23: #{encoder_layer.5} parent=1 // pred_check_branch
      %29 = sbr.rel (0) target = $region25
    $region24: #{encoder_layer.5} parent=1 // pred_region
      _
    $region25: #{encoder_layer.5} parent=1 // pred_fallthru
      _
    // Predicated region
    $region26: #{encoder_layer.5} parent=1 // pred_check
      _
    $region27: #{encoder_layer.5} parent=1 // pred_check_branch
      %31 = sbr.rel (0) target = $region29
    $region28: #{encoder_layer.5} parent=1 // pred_region
      _
    $region29: #{encoder_layer.5} parent=1 // pred_fallthru
      _
    // Predicated region
    $region30: #{encoder_layer.5} parent=1 // pred_check
      _
    $region31: #{encoder_layer.5} parent=1 // pred_check_branch
      %33 = sbr.rel (0) target = $region33
    $region32: #{encoder_layer.5} parent=1 // pred_region
      _
    $region33: #{encoder_layer.5} parent=1 // pred_fallthru
      _
    // Predicated region
    $region34: #{encoder_layer.5} parent=1 // pred_check
      _
    $region35: #{encoder_layer.5} parent=1 // pred_check_branch
      %35 = sbr.rel (0) target = $region37
    $region36: #{encoder_layer.5} parent=1 // pred_region
      _
    $region37: #{encoder_layer.5} parent=1 // pred_fallthru
      _
    // Predicated region
    $region38: #{encoder_layer.5} parent=1 // pred_check
      _
    $region39: #{encoder_layer.5} parent=1 // pred_check_branch
      %37 = sbr.rel (0) target = $region41
    $region40: #{encoder_layer.5} parent=1 // pred_region
      _
    $region41: #{encoder_layer.5} parent=1 // pred_fallthru
      _
    // Predicated region
    $region42: #{encoder_layer.5} parent=1 // pred_check
      _
    $region43: #{encoder_layer.5} parent=1 // pred_check_branch
      %39 = sbr.rel (0) target = $region45
    $region44: #{encoder_layer.5} parent=1 // pred_region
      _
    $region45: #{encoder_layer.5} parent=1 // pred_fallthru
      _
    // Predicated region
    $region46: #{encoder_layer.5} parent=1 // pred_check
      _
    $region47: #{encoder_layer.5} parent=1 // pred_check_branch
      %41 = sbr.rel (0) target = $region49
    $region48: #{encoder_layer.5} parent=1 // pred_region
      _
    $region49: #{encoder_layer.5} parent=1 // pred_fallthru
      _
    %v43 = vld [vmem:[%s1] sm:$0xf]
    %v44 = vld [vmem:[%s1 + $0x4] sm:$0xf]
    %v45 = vld [vmem:[%s2] sm:$0xf]
    %v46 = vld [vmem:[%s2 + $0x4] sm:$0xf]
    %v47 = vld [vmem:[%s2 + $0x8] sm:$0xf]
    %v48 = vld [vmem:[%s2 + $0xc] sm:$0xf]
    %v49 = vld [vmem:[%s3] sm:$0x1]
    %v51 = vlaneseq
    %v52 = vshrl.u32 %v51, 7
    %v53 = vsub.s32 0, %v52
    %v54 = vrot.slane %v49, %v53
    %v58 = vunpack.c.l.b16 %v43
    %v59 = vunpack.c.l.b16 %v44
    %v60 = vpack.c.b16 %v59, %v58
    %v65 = vunpack.c.l.b16 %v45
    %v66 = vunpack.c.l.b16 %v46
    %v67 = vunpack.c.l.b16 %v47
    %v68 = vunpack.c.l.b16 %v48
    %v69 = vpack.c.b16 %v66, %v65
    %v70 = vpack.c.b16 %v68, %v67
    %vm73 = vcmask 261120
    %v75 = vsel %vm73, %v60, 0
    %77 = vmatprep.subr.bf16.mxu0 0
    %78 = vmatpush1.bf16.msra.mxu0 %v69
    %79 = vmatprep.subr.bf16.mxu0 0
    %80 = vmatpush1.bf16.msra.mxu0 %v70
    %81 = vmatprep.subr.bf16.mxu0 0
    %82 = vmatpush1.bf16.msra.mxu0 0
    %83 = vmatprep.subr.bf16.mxu0 0
    %84 = vmatpush1.bf16.msra.mxu0 0
    %85 = vmatprep.subr.bf16.mxu0 0
    %86 = vmatpush1.bf16.msra.mxu0 0
    %87 = vmatprep.subr.bf16.mxu0 0
    %88 = vmatpush1.bf16.msra.mxu0 0
    %89 = vmatprep.subr.bf16.mxu0 0
    %90 = vmatpush1.bf16.msra.mxu0 0
    %91 = vmatprep.subr.bf16.mxu0 0
    %92 = vmatpush1.bf16.msra.mxu0 0
    %93 = vmatprep.subr.bf16.mxu0 0
    %94 = vmatpush1.bf16.msra.mxu0 0
    %95 = vmatprep.subr.bf16.mxu0 0
    %96 = vmatpush1.bf16.msra.mxu0 0
    %97 = vmatprep.subr.bf16.mxu0 0
    %98 = vmatpush1.bf16.msra.mxu0 0
    %99 = vmatprep.subr.bf16.mxu0 0
    %100 = vmatpush1.bf16.msra.mxu0 0
    %101 = vmatprep.subr.bf16.mxu0 0
    %102 = vmatpush1.bf16.msra.mxu0 0
    %103 = vmatprep.subr.bf16.mxu0 0
    %104 = vmatpush1.bf16.msra.mxu0 0
    %105 = vmatprep.subr.bf16.mxu0 0
    %106 = vmatpush1.bf16.msra.mxu0 0
    %107 = vmatprep.subr.bf16.mxu0 0
    %108 = vmatpush1.bf16.msra.mxu0 0
    %109 = vmatprep.mubr.bf16.mxu0 0
    %110 = vmatmul.mubr.bf16.gmra.mrb[0].mxu0 %v75
    %v111 = vpop.f32.mrb[0].mxu0
    %v112 = vadd.f32 %v54, %v111
    %v113 = vpop.f32.mrb[0].mxu0
    %v114 = vpop.f32.mrb[0].mxu0
    %v115 = vadd.f32 %v54, %v114
    %v116 = vpop.f32.mrb[0].mxu0
    %117 = vdwg.mxu0
    %v118 = vld [vmem:[%s0] sm:$0xff]
    %v119 = vld [vmem:[%s0 + $0x8] sm:$0xff]
    %v120 = vadd.f32 %v118, %v112
    %v121 = vadd.f32 %v119, %v115
    %v122 = vsel %vm73, %v120, 0.0
    %123 = vadd.xlane.f32.xlu0 %v122
    %v124 = vpop.xlane.xlu0 %123
    %v125 = vsel %vm73, %v121, 0.0
    %126 = vadd.xlane.f32.xlu0 %v125
    %v127 = vpop.xlane.xlu0 %126
    %v128 = vrcp.pop 32.0
    %v129 = vmul.f32 %v124, %v128
    %v130 = vmul.f32 %v127, %v128
    %v131 = vsub.f32 %v120, %v129
    %v132 = vsub.f32 %v121, %v130
    %v133 = vmul.f32 %v131, %v131
    %v134 = vmul.f32 %v132, %v132
    %v135 = vsel %vm73, %v133, 0.0
    %136 = vadd.xlane.f32.xlu0 %v135
    %v137 = vpop.xlane.xlu0 %136
    %v138 = vsel %vm73, %v134, 0.0
    %139 = vadd.xlane.f32.xlu0 %v138
    %v140 = vpop.xlane.xlu0 %139
    %v141 = vmul.f32 %v137, %v128
    %v142 = vmul.f32 %v140, %v128
    %v143 = vadd.f32 %v141, 1e-05
    %v144 = vadd.f32 %v142, 1e-05
    %v145 = vrsqrt.pop %v143
    %v146 = vrsqrt.pop %v144
    %v147 = vmul.f32 %v131, %v145
    %v148 = vmul.f32 %v132, %v146
    %v149 = vld [vmem:[%s4] sm:$0x1]
    %v151 = vlaneseq
    %v152 = vshrl.u32 %v151, 7
    %v153 = vsub.s32 0, %v152
    %v154 = vrot.slane %v149, %v153
    %v156 = vmul.f32 %v147, %v154
    %v157 = vmul.f32 %v148, %v154
    %v158 = vld [vmem:[%s5] sm:$0x1]
    %v160 = vlaneseq
    %v161 = vshrl.u32 %v160, 7
    %v162 = vsub.s32 0, %v161
    %v163 = vrot.slane %v158, %v162
    %v165 = vadd.f32 %v156, %v163
    %v166 = vadd.f32 %v157, %v163
    %v167 = vpack.c.bf16 %v166, %v165
    %v168 = vld [vmem:[%s6] sm:$0xf]
    %v169 = vld [vmem:[%s6 + $0x4] sm:$0xf]
    %v170 = vld [vmem:[%s6 + $0x8] sm:$0xf]
    %v171 = vld [vmem:[%s6 + $0xc] sm:$0xf]
    %v172 = vld [vmem:[%s7] sm:$0x1]
    %v174 = vlaneseq
    %v175 = vshrl.u32 %v174, 7
    %v176 = vsub.s32 0, %v175
    %v177 = vrot.slane %v172, %v176
    %v183 = vunpack.c.l.b16 %v168
    %v184 = vunpack.c.l.b16 %v169
    %v185 = vunpack.c.l.b16 %v170
    %v186 = vunpack.c.l.b16 %v171
    %v187 = vpack.c.b16 %v184, %v183
    %v188 = vpack.c.b16 %v186, %v185
    %v192 = vsel %vm73, %v167, 0
    %194 = vmatprep.subr.bf16.mxu0 0
    %195 = vmatpush1.bf16.msra.mxu0 %v187
    %196 = vmatprep.subr.bf16.mxu0 0
    %197 = vmatpush1.bf16.msra.mxu0 %v188
    %198 = vmatprep.subr.bf16.mxu0 0
    %199 = vmatpush1.bf16.msra.mxu0 0
    %200 = vmatprep.subr.bf16.mxu0 0
    %201 = vmatpush1.bf16.msra.mxu0 0
    %202 = vmatprep.subr.bf16.mxu0 0
    %203 = vmatpush1.bf16.msra.mxu0 0
    %204 = vmatprep.subr.bf16.mxu0 0
    %205 = vmatpush1.bf16.msra.mxu0 0
    %206 = vmatprep.subr.bf16.mxu0 0
    %207 = vmatpush1.bf16.msra.mxu0 0
    %208 = vmatprep.subr.bf16.mxu0 0
    %209 = vmatpush1.bf16.msra.mxu0 0
    %210 = vmatprep.subr.bf16.mxu0 0
    %211 = vmatpush1.bf16.msra.mxu0 0
    %212 = vmatprep.subr.bf16.mxu0 0
    %213 = vmatpush1.bf16.msra.mxu0 0
    %214 = vmatprep.subr.bf16.mxu0 0
    %215 = vmatpush1.bf16.msra.mxu0 0
    %216 = vmatprep.subr.bf16.mxu0 0
    %217 = vmatpush1.bf16.msra.mxu0 0
    %218 = vmatprep.subr.bf16.mxu0 0
    %219 = vmatpush1.bf16.msra.mxu0 0
    %220 = vmatprep.subr.bf16.mxu0 0
    %221 = vmatpush1.bf16.msra.mxu0 0
    %222 = vmatprep.subr.bf16.mxu0 0
    %223 = vmatpush1.bf16.msra.mxu0 0
    %224 = vmatprep.subr.bf16.mxu0 0
    %225 = vmatpush1.bf16.msra.mxu0 0
    %226 = vmatprep.mubr.bf16.mxu0 0
    %227 = vmatmul.mubr.bf16.gmra.mrb[0].mxu0 %v192
    %v228 = vpop.f32.mrb[0].mxu0
    %v229 = vadd.f32 %v177, %v228
    %v230 = vpop.f32.mrb[0].mxu0
    %v231 = vpop.f32.mrb[0].mxu0
    %v232 = vadd.f32 %v177, %v231
    %v233 = vpop.f32.mrb[0].mxu0
    %234 = vdwg.mxu0
    %v235 = vmax.f32 %v229, 0.0
    %v236 = vmax.f32 %v232, 0.0
    %v237 = vpack.c.bf16 %v236, %v235
    %v238 = vld [vmem:[%s8] sm:$0xf]
    %v239 = vld [vmem:[%s8 + $0x4] sm:$0xf]
    %v240 = vld [vmem:[%s8 + $0x8] sm:$0xf]
    %v241 = vld [vmem:[%s8 + $0xc] sm:$0xf]
    %v242 = vld [vmem:[%s8 + $0x10] sm:$0xf]
    %v243 = vld [vmem:[%s8 + $0x14] sm:$0xf]
    %v244 = vld [vmem:[%s8 + $0x18] sm:$0xf]
    %v245 = vld [vmem:[%s8 + $0x1c] sm:$0xf]
    %v246 = vld [vmem:[%s8 + $0x20] sm:$0xf]
    %v247 = vld [vmem:[%s8 + $0x24] sm:$0xf]
    %v248 = vld [vmem:[%s8 + $0x28] sm:$0xf]
    %v249 = vld [vmem:[%s8 + $0x2c] sm:$0xf]
    %v250 = vld [vmem:[%s8 + $0x30] sm:$0xf]
    %v251 = vld [vmem:[%s8 + $0x34] sm:$0xf]
    %v252 = vld [vmem:[%s8 + $0x38] sm:$0xf]
    %v253 = vld [vmem:[%s8 + $0x3c] sm:$0xf]
    %v254 = vld [vmem:[%s9] sm:$0x1]
    %v256 = vlaneseq
    %v257 = vshrl.u32 %v256, 7
    %v258 = vsub.s32 0, %v257
    %v259 = vrot.slane %v254, %v258
    %v277 = vunpack.c.l.b16 %v238
    %v278 = vunpack.c.l.b16 %v239
    %v279 = vunpack.c.l.b16 %v240
    %v280 = vunpack.c.l.b16 %v241
    %v281 = vunpack.c.l.b16 %v242
    %v282 = vunpack.c.l.b16 %v243
    %v283 = vunpack.c.l.b16 %v244
    %v284 = vunpack.c.l.b16 %v245
    %v285 = vunpack.c.l.b16 %v246
    %v286 = vunpack.c.l.b16 %v247
    %v287 = vunpack.c.l.b16 %v248
    %v288 = vunpack.c.l.b16 %v249
    %v289 = vunpack.c.l.b16 %v250
    %v290 = vunpack.c.l.b16 %v251
    %v291 = vunpack.c.l.b16 %v252
    %v292 = vunpack.c.l.b16 %v253
    %v293 = vpack.c.b16 %v278, %v277
    %v294 = vpack.c.b16 %v280, %v279
    %v295 = vpack.c.b16 %v282, %v281
    %v296 = vpack.c.b16 %v284, %v283
    %v297 = vpack.c.b16 %v286, %v285
    %v298 = vpack.c.b16 %v288, %v287
    %v299 = vpack.c.b16 %v290, %v289
    %v300 = vpack.c.b16 %v292, %v291
    %309 = vmatprep.subr.bf16.mxu0 0
    %310 = vmatpush1.bf16.msra.mxu0 %v293
    %311 = vmatprep.subr.bf16.mxu0 0
    %312 = vmatpush1.bf16.msra.mxu0 %v294
    %313 = vmatprep.subr.bf16.mxu0 0
    %314 = vmatpush1.bf16.msra.mxu0 %v295
    %315 = vmatprep.subr.bf16.mxu0 0
    %316 = vmatpush1.bf16.msra.mxu0 %v296
    %317 = vmatprep.subr.bf16.mxu0 0
    %318 = vmatpush1.bf16.msra.mxu0 %v297
    %319 = vmatprep.subr.bf16.mxu0 0
    %320 = vmatpush1.bf16.msra.mxu0 %v298
    %321 = vmatprep.subr.bf16.mxu0 0
    %322 = vmatpush1.bf16.msra.mxu0 %v299
    %323 = vmatprep.subr.bf16.mxu0 0
    %324 = vmatpush1.bf16.msra.mxu0 %v300
    %325 = vmatprep.subr.bf16.mxu0 0
    %326 = vmatpush1.bf16.msra.mxu0 0
    %327 = vmatprep.subr.bf16.mxu0 0
    %328 = vmatpush1.bf16.msra.mxu0 0
    %329 = vmatprep.subr.bf16.mxu0 0
    %330 = vmatpush1.bf16.msra.mxu0 0
    %331 = vmatprep.subr.bf16.mxu0 0
    %332 = vmatpush1.bf16.msra.mxu0 0
    %333 = vmatprep.subr.bf16.mxu0 0
    %334 = vmatpush1.bf16.msra.mxu0 0
    %335 = vmatprep.subr.bf16.mxu0 0
    %336 = vmatpush1.bf16.msra.mxu0 0
    %337 = vmatprep.subr.bf16.mxu0 0
    %338 = vmatpush1.bf16.msra.mxu0 0
    %339 = vmatprep.subr.bf16.mxu0 0
    %340 = vmatpush1.bf16.msra.mxu0 0
    %341 = vmatprep.mubr.bf16.mxu0 0
    %342 = vmatmul.mubr.bf16.gmra.mrb[0].mxu0 %v237
    %v343 = vpop.f32.mrb[0].mxu0
    %v344 = vadd.f32 %v259, %v343
    %v345 = vpop.f32.mrb[0].mxu0
    %v346 = vpop.f32.mrb[0].mxu0
    %v347 = vadd.f32 %v259, %v346
    %v348 = vpop.f32.mrb[0].mxu0
    %349 = vdwg.mxu0
    %v350 = vadd.f32 %v165, %v344
    %v351 = vadd.f32 %v166, %v347
    %v352 = vsel %vm73, %v350, 0.0
    %353 = vadd.xlane.f32.xlu0 %v352
    %v354 = vpop.xlane.xlu0 %353
    %v355 = vsel %vm73, %v351, 0.0
    %356 = vadd.xlane.f32.xlu0 %v355
    %v357 = vpop.xlane.xlu0 %356
    %v358 = vmul.f32 %v354, %v128
    %v359 = vmul.f32 %v357, %v128
    %v360 = vsub.f32 %v350, %v358
    %v361 = vsub.f32 %v351, %v359
    %v362 = vmul.f32 %v360, %v360
    %v363 = vmul.f32 %v361, %v361
    %v364 = vsel %vm73, %v362, 0.0
    %365 = vadd.xlane.f32.xlu0 %v364
    %v366 = vpop.xlane.xlu0 %365
    %v367 = vsel %vm73, %v363, 0.0
    %368 = vadd.xlane.f32.xlu0 %v367
    %v369 = vpop.xlane.xlu0 %368
    %v370 = vmul.f32 %v366, %v128
    %v371 = vmul.f32 %v369, %v128
    %v372 = vadd.f32 %v370, 1e-05
    %v373 = vadd.f32 %v371, 1e-05
    %v374 = vrsqrt.pop %v372
    %v375 = vrsqrt.pop %v373
    %v376 = vmul.f32 %v360, %v374
    %v377 = vmul.f32 %v361, %v375
    %v378 = vld [vmem:[%s10] sm:$0x1]
    %v380 = vlaneseq
    %v381 = vshrl.u32 %v380, 7
    %v382 = vsub.s32 0, %v381
    %v383 = vrot.slane %v378, %v382
    %v385 = vmul.f32 %v376, %v383
    %v386 = vmul.f32 %v377, %v383
    %v387 = vld [vmem:[%s11] sm:$0x1]
    %v389 = vlaneseq
    %v390 = vshrl.u32 %v389, 7
    %v391 = vsub.s32 0, %v390
    %v392 = vrot.slane %v387, %v391
    %v394 = vadd.f32 %v385, %v392
    %v395 = vadd.f32 %v386, %v392
    %396 = vst.msk [vmem:[#allocation2] sm:$0xff] %vm73, %v394
    %397 = vst.msk [vmem:[#allocation2 + $0x8] sm:$0xff] %vm73, %v395
    // Predicated region
    $region50: #{encoder_layer.5} parent=1 // pred_check
      _
    $region51: #{encoder_layer.5} parent=1 // pred_check_branch
      %399 = sbr.rel (0) target = $region53
    $region52: #{encoder_layer.5} parent=1 // pred_region
      %s401 = ssub.s32 256, 256
      %402 = vsyncadd [#allocation3], %s401
      %s403 = sshll.u32 [#allocation2], 4
      %s404 = int_to_ptr.vmem [resolvable:$true] %s403
      %409 = dma.vmem_to_hbm [thread:$0]  %s404, 256, %s12, [#allocation3], 128, 128, 8
    $region53: #{encoder_layer.5} parent=1 // pred_fallthru
      _
    // Predicated region
    $region54: #{encoder_layer.5} parent=1 // pred_check
      _
    $region55: #{encoder_layer.5} parent=1 // pred_check_branch
      %411 = sbr.rel (0) target = $region57
    $region56: #{encoder_layer.5} parent=1 // pred_region
      %412 = dma.done [#allocation3], 256
    $region57: #{encoder_layer.5} parent=1 // pred_fallthru
      _
    %413 = vsyncpa [#allocation3], 1

// kernel: encoder_layer.4
$region0: #{encoder_layer.4}
  #allocation0 [shape = 'u32[]', space=smem, size = 0x4, offset = 0x4, fixed_abs, tag = 'smem constant byte address 0x4 - core index']
  #allocation1 [shape = 'u32[144,128]{1,0:T(1,128)}', space=vmem, size = 0x12000, scoped, tag = 'internal scratch']
  %s0 = inlined_call_operand.vmem [shape: bf16[2,8,32], index: 0, kind: input, shape index: {}]
  %s1 = inlined_call_operand.vmem [shape: bf16[2,8,32], index: 1, kind: input, shape index: {}]
  %s2 = inlined_call_operand.vmem [shape: bf16[2,8,32], index: 2, kind: input, shape index: {}]
  %s3 = inlined_call_operand.vmem [shape: bf16[2,8,32], index: 3, kind: output, shape index: {0}]
  %s4 = inlined_call_operand.hbm [shape: f32[2,4,8,8], index: 4, kind: output, shape index: {1}]
  %5 = xla_tuple %s3, %s4
  %s6 = sld [smem:[#allocation0]]
  $region53: #{encoder_layer.4} parent=0
    _
  %s8 = ssub.s32 1, %s6
  %s9 = scalar_select 0, %s8, %s6
  $region1: #{encoder_layer.4} parent=0
    #allocation2 [shape = 'u8[32768]{0}', space=vmem, size = 0x8000, scoped, tag = 'output window, operand 1']
    #allocation3 [shape = 's32[2]{0}', space=sflag, size = 0x8, scoped, tag = 'scoped memory for encoder_layer.4']
    %10 = vsyncpa [#allocation3], 0
    %s11 = scalar_lea.sflag [#allocation3], 1
    %12 = vsyncpa %s11, 0
    loop: start=0, step=1, limit=4
    $region2: #{encoder_layer.4} parent=1 // loop_pre_header
      _
    $region3: #{encoder_layer.4} parent=1 // loop_header
      %s14 = sphi 0, %s18
      %p15 = scmp.ge.s32.totalorder %s14, 4
      %s21 = sphi 0, %s40
      %s22 = sphi 0, %s36
      %s23 = sphi 0, %s32
      %s24 = sphi 0, %s21
      %s25 = sphi 0, %s22
      %s26 = sphi 0, %s23
      %s27 = sphi 0, %s24
      %s28 = sphi 0, %s25
      %s29 = sphi 0, %s26
      %s47 = sphi 0, %s49
      %s50 = sphi 0, %s47
      %s51 = sphi 0, %s50
      %s67 = sphi 0, %s51
      %s75 = sphi 0, %s77
      %s78 = sphi 0, %s75
      %s79 = sphi 0, %s78
      %s95 = sphi 0, %s79
      %s103 = sphi 0, %s105
      %s106 = sphi 0, %s103
      %s107 = sphi 0, %s106
      %s123 = sphi 0, %s107
      %s133 = sphi 0, %s135
      %s136 = sphi 0, %s133
      %s137 = sphi 0, %s136
      %s153 = sphi 0, %s137
      %s163 = sphi 0, %s165
      %s166 = sphi 0, %s163
      %s167 = sphi 0, %s166
      %s183 = sphi 0, %s167
    $region4: #{encoder_layer.4} parent=1 // loop_header_branch
      %17 = sbr.rel (%p15) target = $region8
    $region5: #{encoder_layer.4} parent=1 // loop_body
      %s19 = ssub.s32 %s14, 1
      %s20 = ssub.s32 %s14, 2
      %s30 = sadd.s32 1, %s23
      %p31 = scmp.ge.s32.totalorder %s30, 1
      %s32 = scalar_select %p31, 0, %s30
      %s33 = sadd.s32 1, %s22
      %s34 = scalar_select %p31, %s33, %s22
      %p35 = scmp.ge.s32.totalorder %s34, 1
      %s36 = scalar_select %p35, 0, %s34
      %s37 = sadd.s32 1, %s21
      %s38 = scalar_select %p35, %s37, %s21
      %p39 = scmp.ge.s32.totalorder %s38, 2
      %s40 = scalar_select %p39, 0, %s38
      %s41 = ssub.s32 %s21, %s40
      %s42 = ssub.s32 %s23, %s32
      %s43 = sor.u32 %s41, %s42
      %s44 = ssub.s32 %s22, %s36
      %s45 = sor.u32 %s43, %s44
      %p46 = scmp.eq.s32.totalorder %s45, 0
      %s48 = sadd.s32 %s47, 1
      %s49 = scalar_select %p46, %s47, %s48
      %p52 = pneg %p46
      %p53 = scmp.eq.s32.totalorder %s14, 1
      %p54 = por %p52, %p53
      %p55 = scmp.ne.s32.totalorder %s47, %s50
      %p56 = scmp.eq.s32.totalorder %s14, 0
      %p57 = por %p55, %p56
      %p58 = scmp.ne.s32.totalorder %s47, %s50
      %p59 = scmp.eq.s32.totalorder %s19, 1
      %p60 = por %p58, %p59
      %p61 = scmp.ne.s32.totalorder %s50, %s51
      %p62 = scmp.eq.s32.totalorder %s19, 0
      %p63 = por %p61, %p62
      %p64 = scmp.ne.s32.totalorder %s50, %s51
      %p65 = scmp.eq.s32.totalorder %s20, 1
      %p66 = por %p64, %p65
      %p68 = scmp.ne.s32.totalorder %s51, %s67
      %p69 = scmp.eq.s32.totalorder %s20, 0
      %p70 = por %p68, %p69
      %s71 = ssub.s32 %s21, %s40
      %s72 = ssub.s32 %s22, %s36
      %s73 = sor.u32 %s71, %s72
      %p74 = scmp.eq.s32.totalorder %s73, 0
      %s76 = sadd.s32 %s75, 1
      %s77 = scalar_select %p74, %s75, %s76
      %p80 = pneg %p74
      %p81 = scmp.eq.s32.totalorder %s14, 1
      %p82 = por %p80, %p81
      %p83 = scmp.ne.s32.totalorder %s75, %s78
      %p84 = scmp.eq.s32.totalorder %s14, 0
      %p85 = por %p83, %p84
      %p86 = scmp.ne.s32.totalorder %s75, %s78
      %p87 = scmp.eq.s32.totalorder %s19, 1
      %p88 = por %p86, %p87
      %p89 = scmp.ne.s32.totalorder %s78, %s79
      %p90 = scmp.eq.s32.totalorder %s19, 0
      %p91 = por %p89, %p90
      %p92 = scmp.ne.s32.totalorder %s78, %s79
      %p93 = scmp.eq.s32.totalorder %s20, 1
      %p94 = por %p92, %p93
      %p96 = scmp.ne.s32.totalorder %s79, %s95
      %p97 = scmp.eq.s32.totalorder %s20, 0
      %p98 = por %p96, %p97
      %s99 = ssub.s32 %s21, %s40
      %s100 = ssub.s32 %s22, %s36
      %s101 = sor.u32 %s99, %s100
      %p102 = scmp.eq.s32.totalorder %s101, 0
      %s104 = sadd.s32 %s103, 1
      %s105 = scalar_select %p102, %s103, %s104
      %p108 = pneg %p102
      %p109 = scmp.eq.s32.totalorder %s14, 1
      %p110 = por %p108, %p109
      %p111 = scmp.ne.s32.totalorder %s103, %s106
      %p112 = scmp.eq.s32.totalorder %s14, 0
      %p113 = por %p111, %p112
      %p114 = scmp.ne.s32.totalorder %s103, %s106
      %p115 = scmp.eq.s32.totalorder %s19, 1
      %p116 = por %p114, %p115
      %p117 = scmp.ne.s32.totalorder %s106, %s107
      %p118 = scmp.eq.s32.totalorder %s19, 0
      %p119 = por %p117, %p118
      %p120 = scmp.ne.s32.totalorder %s106, %s107
      %p121 = scmp.eq.s32.totalorder %s20, 1
      %p122 = por %p120, %p121
      %p124 = scmp.ne.s32.totalorder %s107, %s123
      %p125 = scmp.eq.s32.totalorder %s20, 0
      %p126 = por %p124, %p125
      %s127 = ssub.s32 %s21, %s40
      %s128 = ssub.s32 %s23, %s32
      %s129 = sor.u32 %s127, %s128
      %s130 = ssub.s32 %s22, %s36
      %s131 = sor.u32 %s129, %s130
      %p132 = scmp.eq.s32.totalorder %s131, 0
      %s134 = sadd.s32 %s133, 1
      %s135 = scalar_select %p132, %s133, %s134
      %p138 = pneg %p132
      %p139 = scmp.eq.s32.totalorder %s14, 1
      %p140 = por %p138, %p139
      %p141 = scmp.ne.s32.totalorder %s133, %s136
      %p142 = scmp.eq.s32.totalorder %s14, 0
      %p143 = por %p141, %p142
      %p144 = scmp.ne.s32.totalorder %s133, %s136
      %p145 = scmp.eq.s32.totalorder %s19, 1
      %p146 = por %p144, %p145
      %p147 = scmp.ne.s32.totalorder %s136, %s137
      %p148 = scmp.eq.s32.totalorder %s19, 0
      %p149 = por %p147, %p148
      %p150 = scmp.ne.s32.totalorder %s136, %s137
      %p151 = scmp.eq.s32.totalorder %s20, 1
      %p152 = por %p150, %p151
      %p154 = scmp.ne.s32.totalorder %s137, %s153
      %p155 = scmp.eq.s32.totalorder %s20, 0
      %p156 = por %p154, %p155
      %s157 = ssub.s32 %s21, %s40
      %s158 = ssub.s32 %s22, %s36
      %s159 = sor.u32 %s157, %s158
      %s160 = ssub.s32 %s23, %s32
      %s161 = sor.u32 %s159, %s160
      %p162 = scmp.eq.s32.totalorder %s161, 0
      %s164 = sadd.s32 %s163, 1
      %s165 = scalar_select %p162, %s163, %s164
      %p168 = pneg %p162
      %p169 = scmp.eq.s32.totalorder %s14, 1
      %p170 = por %p168, %p169
      %p171 = scmp.ne.s32.totalorder %s163, %s166
      %p172 = scmp.eq.s32.totalorder %s14, 0
      %p173 = por %p171, %p172
      %p174 = scmp.ne.s32.totalorder %s163, %s166
      %p175 = scmp.eq.s32.totalorder %s19, 1
      %p176 = por %p174, %p175
      %p177 = scmp.ne.s32.totalorder %s166, %s167
      %p178 = scmp.eq.s32.totalorder %s19, 0
      %p179 = por %p177, %p178
      %p180 = scmp.ne.s32.totalorder %s166, %s167
      %p181 = scmp.eq.s32.totalorder %s20, 1
      %p182 = por %p180, %p181
      %p184 = scmp.ne.s32.totalorder %s167, %s183
      %p185 = scmp.eq.s32.totalorder %s20, 0
      %p186 = por %p184, %p185
      %p187 = scmp.le.s32.totalorder 1, %s14
      %p188 = scmp.lt.s32.totalorder %s14, 3
      %p189 = pnand %p187, %p188
      %p190 = pneg %p189
      // Predicated region
      $region9: #{encoder_layer.4} parent=5 // pred_check
        _
      $region10: #{encoder_layer.4} parent=5 // pred_check_branch
        %192 = sbr.rel (%p189) target = $region12
      $region11: #{encoder_layer.4} parent=5 // pred_region
        %s193 = ssub.s32 %s14, 1
      $region12: #{encoder_layer.4} parent=5 // pred_fallthru
        _
      %p194 = scmp.lt.s32.totalorder %s14, 2
      // Predicated region
      $region13: #{encoder_layer.4} parent=5 // pred_check
        %p195 = pneg %p194
      $region14: #{encoder_layer.4} parent=5 // pred_check_branch
        %197 = sbr.rel (%p195) target = $region16
      $region15: #{encoder_layer.4} parent=5 // pred_region
        // Predicated region
        $region17: #{encoder_layer.4} parent=15 // pred_check
          %p198 = pneg %p57
        $region18: #{encoder_layer.4} parent=15 // pred_check_branch
          %200 = sbr.rel (%p198) target = $region20
        $region19: #{encoder_layer.4} parent=15 // pred_region
          %p201 = scmp.lt.s32.totalorder %s21, 1
          %s202 = scalar_select %p201, %s21, 1
          %p203 = scmp.lt.s32.totalorder %s23, 0
          %s204 = scalar_select %p203, %s23, 0
          %p205 = scmp.lt.s32.totalorder %s22, 0
          %s206 = scalar_select %p205, %s22, 0
          %s207 = sadd.s32 %s206, %s204
          %s208 = sadd.s32 %s207, %s202
          %s209 = smul.addr %s208, 4
          %s210 = scalar_lea.vmem %s0, %s209
        $region20: #{encoder_layer.4} parent=15 // pred_fallthru
          _
        // Predicated region
        $region21: #{encoder_layer.4} parent=15 // pred_check
          %p211 = pneg %p85
        $region22: #{encoder_layer.4} parent=15 // pred_check_branch
          %213 = sbr.rel (%p211) target = $region24
        $region23: #{encoder_layer.4} parent=15 // pred_region
          %p214 = scmp.lt.s32.totalorder %s21, 1
          %s215 = scalar_select %p214, %s21, 1
          %p216 = scmp.lt.s32.totalorder %s22, 0
          %s217 = scalar_select %p216, %s22, 0
          %s218 = sadd.s32 %s217, %s215
          %s219 = smul.addr %s218, 4
          %s220 = scalar_lea.vmem %s1, %s219
        $region24: #{encoder_layer.4} parent=15 // pred_fallthru
          _
        // Predicated region
        $region25: #{encoder_layer.4} parent=15 // pred_check
          %p221 = pneg %p113
        $region26: #{encoder_layer.4} parent=15 // pred_check_branch
          %223 = sbr.rel (%p221) target = $region28
        $region27: #{encoder_layer.4} parent=15 // pred_region
          %p224 = scmp.lt.s32.totalorder %s21, 1
          %s225 = scalar_select %p224, %s21, 1
          %p226 = scmp.lt.s32.totalorder %s22, 0
          %s227 = scalar_select %p226, %s22, 0
          %s228 = sadd.s32 %s227, %s225
          %s229 = smul.addr %s228, 4
          %s230 = scalar_lea.vmem %s2, %s229
        $region28: #{encoder_layer.4} parent=15 // pred_fallthru
          _
      $region16: #{encoder_layer.4} parent=5 // pred_fallthru
        _
      %p231 = scmp.le.s32.totalorder 1, %s14
      %p232 = scmp.lt.s32.totalorder %s14, 3
      %p233 = pnand %p231, %p232
      %p234 = pneg %p233
      // Predicated region
      $region29: #{encoder_layer.4} parent=5 // pred_check
        _
      $region30: #{encoder_layer.4} parent=5 // pred_check_branch
        %236 = sbr.rel (%p233) target = $region32
      $region31: #{encoder_layer.4} parent=5 // pred_region
        %s237 = ssub.s32 %s14, 1
        %p238 = scmp.lt.s32.totalorder %s24, 1
        %s239 = scalar_select %p238, %s24, 1
        %p240 = scmp.lt.s32.totalorder %s26, 0
        %s241 = scalar_select %p240, %s26, 0
        %p242 = scmp.lt.s32.totalorder %s25, 0
        %s243 = scalar_select %p242, %s25, 0
        %s244 = sadd.s32 %s243, %s241
        %s245 = sadd.s32 %s244, %s239
        %s246 = smul.addr %s245, 4
        %s247 = scalar_lea.vmem %s0, %s246
        %p248 = pneg %p63
        %p249 = pneg %p60
        %p250 = scmp.lt.s32.totalorder %s24, 1
        %s251 = scalar_select %p250, %s24, 1
        %p252 = scmp.lt.s32.totalorder %s25, 0
        %s253 = scalar_select %p252, %s25, 0
        %s254 = sadd.s32 %s253, %s251
        %s255 = smul.addr %s254, 4
        %s256 = scalar_lea.vmem %s1, %s255
        %p257 = pneg %p91
        %p258 = pneg %p88
        %p259 = scmp.lt.s32.totalorder %s24, 1
        %s260 = scalar_select %p259, %s24, 1
        %p261 = scmp.lt.s32.totalorder %s25, 0
        %s262 = scalar_select %p261, %s25, 0
        %s263 = sadd.s32 %s262, %s260
        %s264 = smul.addr %s263, 4
        %s265 = scalar_lea.vmem %s2, %s264
        %p266 = pneg %p119
        %p267 = pneg %p116
        %p268 = pneg %p149
        %p269 = pneg %p146
        %p270 = scmp.lt.s32.totalorder %s24, 1
        %s271 = scalar_select %p270, %s24, 1
        %p272 = scmp.lt.s32.totalorder %s26, 0
        %s273 = scalar_select %p272, %s26, 0
        %p274 = scmp.lt.s32.totalorder %s25, 0
        %s275 = scalar_select %p274, %s25, 0
        %s276 = sadd.s32 %s275, %s273
        %s277 = sadd.s32 %s276, %s271
        %s278 = smul.addr %s277, 4
        %s279 = scalar_lea.vmem %s3, %s278
        %p280 = pneg %p179
        %p281 = pneg %p176
        %s282 = sand.u32 %s166, 1
        %s283 = scalar_lea.sflag [#allocation3], %s282
        %s284 = sand.u32 %s166, 1
        %s285 = smul.addr %s284, 32
        %s286 = scalar_lea.vmem [#allocation2], %s285
        %p287 = scmp.lt.s32.totalorder %s24, 1
        %s288 = scalar_select %p287, %s24, 1
        %p289 = scmp.lt.s32.totalorder %s26, 0
        %s290 = scalar_select %p289, %s26, 0
        %p291 = scmp.lt.s32.totalorder %s25, 0
        %s292 = scalar_select %p291, %s25, 0
        %s293 = sadd.s32 %s292, %s290
        %s294 = sadd.s32 %s293, %s288
        %s295 = smul.addr %s294, 4
        %s296 = scalar_lea.vmem %s0, %s295
        %p297 = scmp.lt.s32.totalorder %s24, 1
        %s298 = scalar_select %p297, %s24, 1
        %p299 = scmp.lt.s32.totalorder %s25, 0
        %s300 = scalar_select %p299, %s25, 0
        %s301 = sadd.s32 %s300, %s298
        %s302 = smul.addr %s301, 4
        %s303 = scalar_lea.vmem %s1, %s302
        %p304 = scmp.lt.s32.totalorder %s24, 1
        %s305 = scalar_select %p304, %s24, 1
        %p306 = scmp.lt.s32.totalorder %s25, 0
        %s307 = scalar_select %p306, %s25, 0
        %s308 = sadd.s32 %s307, %s305
        %s309 = smul.addr %s308, 4
        %s310 = scalar_lea.vmem %s2, %s309
        %p311 = scmp.lt.s32.totalorder %s24, 1
        %s312 = scalar_select %p311, %s24, 1
        %p313 = scmp.lt.s32.totalorder %s26, 0
        %s314 = scalar_select %p313, %s26, 0
        %p315 = scmp.lt.s32.totalorder %s25, 0
        %s316 = scalar_select %p315, %s25, 0
        %s317 = sadd.s32 %s316, %s314
        %s318 = sadd.s32 %s317, %s312
        %s319 = smul.addr %s318, 4
        %s320 = scalar_lea.vmem %s3, %s319
        %s321 = smul.u32 4, %s25
        %v323 = vld [vmem:[%s296] sm:$0xf]
        %v324 = vld [vmem:[%s303] sm:$0xf]
        %v325 = vld [vmem:[%s310] sm:$0xf]
        %vm326 = vcmask 64512
        %v328 = vsel %vm326, %v323, 0
        %v331 = vsel %vm326, %v324, 0
        %333 = vmatprep.subr.bf16.mxu0 0
        %334 = vmatpush1.bf16.xpose.msra.mxu0 %v331
        %335 = vmatprep.subr.bf16.mxu0 0
        %336 = vmatpush1.bf16.xpose.msra.mxu0 0
        %337 = vmatprep.subr.bf16.mxu0 0
        %338 = vmatpush1.bf16.xpose.msra.mxu0 0
        %339 = vmatprep.subr.bf16.mxu0 0
        %340 = vmatpush1.bf16.xpose.msra.mxu0 0
        %341 = vmatprep.subr.bf16.mxu0 0
        %342 = vmatpush1.bf16.xpose.msra.mxu0 0
        %343 = vmatprep.subr.bf16.mxu0 0
        %344 = vmatpush1.bf16.xpose.msra.mxu0 0
        %345 = vmatprep.subr.bf16.mxu0 0
        %346 = vmatpush1.bf16.xpose.msra.mxu0 0
        %347 = vmatprep.subr.bf16.mxu0 0
        %348 = vmatpush1.bf16.xpose.msra.mxu0 0
        %349 = vmatprep.subr.bf16.mxu0 0
        %350 = vmatpush1.bf16.xpose.msra.mxu0 0
        %351 = vmatprep.subr.bf16.mxu0 0
        %352 = vmatpush1.bf16.xpose.msra.mxu0 0
        %353 = vmatprep.subr.bf16.mxu0 0
        %354 = vmatpush1.bf16.xpose.msra.mxu0 0
        %355 = vmatprep.subr.bf16.mxu0 0
        %356 = vmatpush1.bf16.xpose.msra.mxu0 0
        %357 = vmatprep.subr.bf16.mxu0 0
        %358 = vmatpush1.bf16.xpose.msra.mxu0 0
        %359 = vmatprep.subr.bf16.mxu0 0
        %360 = vmatpush1.bf16.xpose.msra.mxu0 0
        %361 = vmatprep.subr.bf16.mxu0 0
        %362 = vmatpush1.bf16.xpose.msra.mxu0 0
        %363 = vmatprep.subr.bf16.mxu0 0
        %364 = vmatpush1.bf16.xpose.msra.mxu0 0
        %365 = vmatprep.mubr.bf16.mxu0 0
        %366 = vmatmul.mubr.bf16.gmra.mrb[0].mxu0 %v328
        %v367 = vpop.f32.mrb[0].mxu0
        %v368 = vadd.f32 0.0, %v367
        %v369 = vpop.f32.mrb[0].mxu0
        %v370 = vpop.f32.mrb[0].mxu0
        %v371 = vpop.f32.mrb[0].mxu0
        %372 = vdwg.mxu0
        %v373 = vmul.f32 %v368, 0.35355338
        %v374 = vsel %vm326, %v373, -inf
        %375 = vmax.xlane.f32.xlu0 %v374
        %v376 = vpop.xlane.xlu0 %375
        %v377 = vsub.f32 %v373, %v376
        %v378 = vmul.f32 %v377, 1.442695
        %v379 = vpow.pop %v378
        %v380 = vsel %vm326, %v379, 0.0
        %381 = vadd.xlane.f32.xlu0 %v380
        %v382 = vpop.xlane.xlu0 %381
        %v383 = vrcp.pop %v382
        %v384 = vmul.f32 %v379, %v383
        %v385 = vpack.c.bf16 %v384, %v384
        %v387 = vsel %vm326, %v385, 0
        %vm389 = vcmask 1043456
        %v391 = vsel %vm389, %v325, 0
        %393 = vmatprep.subr.bf16.mxu0 0
        %394 = vmatpush1.bf16.msra.mxu0 %v391
        %395 = vmatprep.subr.bf16.mxu0 0
        %396 = vmatpush1.bf16.msra.mxu0 0
        %397 = vmatprep.subr.bf16.mxu0 0
        %398 = vmatpush1.bf16.msra.mxu0 0
        %399 = vmatprep.subr.bf16.mxu0 0
        %400 = vmatpush1.bf16.msra.mxu0 0
        %401 = vmatprep.subr.bf16.mxu0 0
        %402 = vmatpush1.bf16.msra.mxu0 0
        %403 = vmatprep.subr.bf16.mxu0 0
        %404 = vmatpush1.bf16.msra.mxu0 0
        %405 = vmatprep.subr.bf16.mxu0 0
        %406 = vmatpush1.bf16.msra.mxu0 0
        %407 = vmatprep.subr.bf16.mxu0 0
        %408 = vmatpush1.bf16.msra.mxu0 0
        %409 = vmatprep.subr.bf16.mxu0 0
        %410 = vmatpush1.bf16.msra.mxu0 0
        %411 = vmatprep.subr.bf16.mxu0 0
        %412 = vmatpush1.bf16.msra.mxu0 0
        %413 = vmatprep.subr.bf16.mxu0 0
        %414 = vmatpush1.bf16.msra.mxu0 0
        %415 = vmatprep.subr.bf16.mxu0 0
        %416 = vmatpush1.bf16.msra.mxu0 0
        %417 = vmatprep.subr.bf16.mxu0 0
        %418 = vmatpush1.bf16.msra.mxu0 0
        %419 = vmatprep.subr.bf16.mxu0 0
        %420 = vmatpush1.bf16.msra.mxu0 0
        %421 = vmatprep.subr.bf16.mxu0 0
        %422 = vmatpush1.bf16.msra.mxu0 0
        %423 = vmatprep.subr.bf16.mxu0 0
        %424 = vmatpush1.bf16.msra.mxu0 0
        %425 = vmatprep.mubr.bf16.mxu0 0
        %426 = vmatmul.mubr.bf16.gmra.mrb[0].mxu0 %v387
        %v427 = vpop.f32.mrb[0].mxu0
        %v428 = vadd.f32 0.0, %v427
        %v429 = vpop.f32.mrb[0].mxu0
        %v430 = vpop.f32.mrb[0].mxu0
        %v431 = vpop.f32.mrb[0].mxu0
        %432 = vdwg.mxu0
        %433 = vst.msk [vmem:[%s286] sm:$0xff] %vm326, %v384
        %v435 = vunpack.c.l.b16 %v323
        %v436 = vpack.c.b16 %v435, %v435
        %437 = vrot.lane.b32.xlu0 %v436, 120
        %v438 = vpop.permute.xlu0 %437
        %v440 = vunpack.c.l.b16 %v324
        %v441 = vpack.c.b16 %v440, %v440
        %442 = vrot.lane.b32.xlu0 %v441, 120
        %v443 = vpop.permute.xlu0 %442
        %v445 = vsel %vm326, %v438, 0
        %v448 = vsel %vm326, %v443, 0
        %450 = vmatprep.subr.bf16.mxu0 0
        %451 = vmatpush1.bf16.xpose.msra.mxu0 %v448
        %452 = vmatprep.subr.bf16.mxu0 0
        %453 = vmatpush1.bf16.xpose.msra.mxu0 0
        %454 = vmatprep.subr.bf16.mxu0 0
        %455 = vmatpush1.bf16.xpose.msra.mxu0 0
        %456 = vmatprep.subr.bf16.mxu0 0
        %457 = vmatpush1.bf16.xpose.msra.mxu0 0
        %458 = vmatprep.subr.bf16.mxu0 0
        %459 = vmatpush1.bf16.xpose.msra.mxu0 0
        %460 = vmatprep.subr.bf16.mxu0 0
        %461 = vmatpush1.bf16.xpose.msra.mxu0 0
        %462 = vmatprep.subr.bf16.mxu0 0
        %463 = vmatpush1.bf16.xpose.msra.mxu0 0
        %464 = vmatprep.subr.bf16.mxu0 0
        %465 = vmatpush1.bf16.xpose.msra.mxu0 0
        %466 = vmatprep.subr.bf16.mxu0 0
        %467 = vmatpush1.bf16.xpose.msra.mxu0 0
        %468 = vmatprep.subr.bf16.mxu0 0
        %469 = vmatpush1.bf16.xpose.msra.mxu0 0
        %470 = vmatprep.subr.bf16.mxu0 0
        %471 = vmatpush1.bf16.xpose.msra.mxu0 0
        %472 = vmatprep.subr.bf16.mxu0 0
        %473 = vmatpush1.bf16.xpose.msra.mxu0 0
        %474 = vmatprep.subr.bf16.mxu0 0
        %475 = vmatpush1.bf16.xpose.msra.mxu0 0
        %476 = vmatprep.subr.bf16.mxu0 0
        %477 = vmatpush1.bf16.xpose.msra.mxu0 0
        %478 = vmatprep.subr.bf16.mxu0 0
        %479 = vmatpush1.bf16.xpose.msra.mxu0 0
        %480 = vmatprep.subr.bf16.mxu0 0
        %481 = vmatpush1.bf16.xpose.msra.mxu0 0
        %482 = vmatprep.mubr.bf16.mxu0 0
        %483 = vmatmul.mubr.bf16.gmra.mrb[0].mxu0 %v445
        %v484 = vpop.f32.mrb[0].mxu0
        %v485 = vadd.f32 0.0, %v484
        %v486 = vpop.f32.mrb[0].mxu0
        %v487 = vpop.f32.mrb[0].mxu0
        %v488 = vpop.f32.mrb[0].mxu0
        %489 = vdwg.mxu0
        %v490 = vmul.f32 %v485, 0.35355338
        %v491 = vsel %vm326, %v490, -inf
        %492 = vmax.xlane.f32.xlu0 %v491
        %v493 = vpop.xlane.xlu0 %492
        %v494 = vsub.f32 %v490, %v493
        %v495 = vmul.f32 %v494, 1.442695
        %v496 = vpow.pop %v495
        %v497 = vsel %vm326, %v496, 0.0
        %498 = vadd.xlane.f32.xlu0 %v497
        %v499 = vpop.xlane.xlu0 %498
        %v500 = vrcp.pop %v499
        %v501 = vmul.f32 %v496, %v500
        %v502 = vpack.c.bf16 %v501, %v501
        %v504 = vunpack.c.l.b16 %v325
        %v505 = vpack.c.b16 %v504, %v504
        %506 = vrot.lane.b32.xlu0 %v505, 120
        %v507 = vpop.permute.xlu0 %506
        %v509 = vsel %vm326, %v502, 0
        %v512 = vsel %vm389, %v507, 0
        %514 = vmatprep.subr.bf16.mxu0 0
        %515 = vmatpush1.bf16.msra.mxu0 %v512
        %516 = vmatprep.subr.bf16.mxu0 0
        %517 = vmatpush1.bf16.msra.mxu0 0
        %518 = vmatprep.subr.bf16.mxu0 0
        %519 = vmatpush1.bf16.msra.mxu0 0
        %520 = vmatprep.subr.bf16.mxu0 0
        %521 = vmatpush1.bf16.msra.mxu0 0
        %522 = vmatprep.subr.bf16.mxu0 0
        %523 = vmatpush1.bf16.msra.mxu0 0
        %524 = vmatprep.subr.bf16.mxu0 0
        %525 = vmatpush1.bf16.msra.mxu0 0
        %526 = vmatprep.subr.bf16.mxu0 0
        %527 = vmatpush1.bf16.msra.mxu0 0
        %528 = vmatprep.subr.bf16.mxu0 0
        %529 = vmatpush1.bf16.msra.mxu0 0
        %530 = vmatprep.subr.bf16.mxu0 0
        %531 = vmatpush1.bf16.msra.mxu0 0
        %532 = vmatprep.subr.bf16.mxu0 0
        %533 = vmatpush1.bf16.msra.mxu0 0
        %534 = vmatprep.subr.bf16.mxu0 0
        %535 = vmatpush1.bf16.msra.mxu0 0
        %536 = vmatprep.subr.bf16.mxu0 0
        %537 = vmatpush1.bf16.msra.mxu0 0
        %538 = vmatprep.subr.bf16.mxu0 0
        %539 = vmatpush1.bf16.msra.mxu0 0
        %540 = vmatprep.subr.bf16.mxu0 0
        %541 = vmatpush1.bf16.msra.mxu0 0
        %542 = vmatprep.subr.bf16.mxu0 0
        %543 = vmatpush1.bf16.msra.mxu0 0
        %544 = vmatprep.subr.bf16.mxu0 0
        %545 = vmatpush1.bf16.msra.mxu0 0
        %546 = vmatprep.mubr.bf16.mxu0 0
        %547 = vmatmul.mubr.bf16.gmra.mrb[0].mxu0 %v509
        %v548 = vpop.f32.mrb[0].mxu0
        %v549 = vadd.f32 0.0, %v548
        %v550 = vpop.f32.mrb[0].mxu0
        %v551 = vpop.f32.mrb[0].mxu0
        %v552 = vpop.f32.mrb[0].mxu0
        %553 = vdwg.mxu0
        %s554 = scalar_lea.vmem %s286, 8 [#allocation2]
        %555 = vst.msk [vmem:[%s554] sm:$0xff] %vm326, %v501
        %556 = vrot.lane.b32.xlu0 %v436, 112
        %v557 = vpop.permute.xlu0 %556
        %558 = vrot.lane.b32.xlu0 %v441, 112
        %v559 = vpop.permute.xlu0 %558
        %v561 = vsel %vm326, %v557, 0
        %v564 = vsel %vm326, %v559, 0
        %566 = vmatprep.subr.bf16.mxu0 0
        %567 = vmatpush1.bf16.xpose.msra.mxu0 %v564
        %568 = vmatprep.subr.bf16.mxu0 0
        %569 = vmatpush1.bf16.xpose.msra.mxu0 0
        %570 = vmatprep.subr.bf16.mxu0 0
        %571 = vmatpush1.bf16.xpose.msra.mxu0 0
        %572 = vmatprep.subr.bf16.mxu0 0
        %573 = vmatpush1.bf16.xpose.msra.mxu0 0
        %574 = vmatprep.subr.bf16.mxu0 0
        %575 = vmatpush1.bf16.xpose.msra.mxu0 0
        %576 = vmatprep.subr.bf16.mxu0 0
        %577 = vmatpush1.bf16.xpose.msra.mxu0 0
        %578 = vmatprep.subr.bf16.mxu0 0
        %579 = vmatpush1.bf16.xpose.msra.mxu0 0
        %580 = vmatprep.subr.bf16.mxu0 0
        %581 = vmatpush1.bf16.xpose.msra.mxu0 0
        %582 = vmatprep.subr.bf16.mxu0 0
        %583 = vmatpush1.bf16.xpose.msra.mxu0 0
        %584 = vmatprep.subr.bf16.mxu0 0
        %585 = vmatpush1.bf16.xpose.msra.mxu0 0
        %586 = vmatprep.subr.bf16.mxu0 0
        %587 = vmatpush1.bf16.xpose.msra.mxu0 0
        %588 = vmatprep.subr.bf16.mxu0 0
        %589 = vmatpush1.bf16.xpose.msra.mxu0 0
        %590 = vmatprep.subr.bf16.mxu0 0
        %591 = vmatpush1.bf16.xpose.msra.mxu0 0
        %592 = vmatprep.subr.bf16.mxu0 0
        %593 = vmatpush1.bf16.xpose.msra.mxu0 0
        %594 = vmatprep.subr.bf16.mxu0 0
        %595 = vmatpush1.bf16.xpose.msra.mxu0 0
        %596 = vmatprep.subr.bf16.mxu0 0
        %597 = vmatpush1.bf16.xpose.msra.mxu0 0
        %598 = vmatprep.mubr.bf16.mxu0 0
        %599 = vmatmul.mubr.bf16.gmra.mrb[0].mxu0 %v561
        %v600 = vpop.f32.mrb[0].mxu0
        %v601 = vadd.f32 0.0, %v600
        %v602 = vpop.f32.mrb[0].mxu0
        %v603 = vpop.f32.mrb[0].mxu0
        %v604 = vpop.f32.mrb[0].mxu0
        %605 = vdwg.mxu0
        %v606 = vmul.f32 %v601, 0.35355338
        %v607 = vsel %vm326, %v606, -inf
        %608 = vmax.xlane.f32.xlu0 %v607
        %v609 = vpop.xlane.xlu0 %608
        %v610 = vsub.f32 %v606, %v609
        %v611 = vmul.f32 %v610, 1.442695
        %v612 = vpow.pop %v611
        %v613 = vsel %vm326, %v612, 0.0
        %614 = vadd.xlane.f32.xlu0 %v613
        %v615 = vpop.xlane.xlu0 %614
        %v616 = vrcp.pop %v615
        %v617 = vmul.f32 %v612, %v616
        %v618 = vpack.c.bf16 %v617, %v617
        %619 = vrot.lane.b32.xlu0 %v505, 112
        %v620 = vpop.permute.xlu0 %619
        %v622 = vsel %vm326, %v618, 0
        %v625 = vsel %vm389, %v620, 0
        %627 = vmatprep.subr.bf16.mxu0 0
        %628 = vmatpush1.bf16.msra.mxu0 %v625
        %629 = vmatprep.subr.bf16.mxu0 0
        %630 = vmatpush1.bf16.msra.mxu0 0
        %631 = vmatprep.subr.bf16.mxu0 0
        %632 = vmatpush1.bf16.msra.mxu0 0
        %633 = vmatprep.subr.bf16.mxu0 0
        %634 = vmatpush1.bf16.msra.mxu0 0
        %635 = vmatprep.subr.bf16.mxu0 0
        %636 = vmatpush1.bf16.msra.mxu0 0
        %637 = vmatprep.subr.bf16.mxu0 0
        %638 = vmatpush1.bf16.msra.mxu0 0
        %639 = vmatprep.subr.bf16.mxu0 0
        %640 = vmatpush1.bf16.msra.mxu0 0
        %641 = vmatprep.subr.bf16.mxu0 0
        %642 = vmatpush1.bf16.msra.mxu0 0
        %643 = vmatprep.subr.bf16.mxu0 0
        %644 = vmatpush1.bf16.msra.mxu0 0
        %645 = vmatprep.subr.bf16.mxu0 0
        %646 = vmatpush1.bf16.msra.mxu0 0
        %647 = vmatprep.subr.bf16.mxu0 0
        %648 = vmatpush1.bf16.msra.mxu0 0
        %649 = vmatprep.subr.bf16.mxu0 0
        %650 = vmatpush1.bf16.msra.mxu0 0
        %651 = vmatprep.subr.bf16.mxu0 0
        %652 = vmatpush1.bf16.msra.mxu0 0
        %653 = vmatprep.subr.bf16.mxu0 0
        %654 = vmatpush1.bf16.msra.mxu0 0
        %655 = vmatprep.subr.bf16.mxu0 0
        %656 = vmatpush1.bf16.msra.mxu0 0
        %657 = vmatprep.subr.bf16.mxu0 0
        %658 = vmatpush1.bf16.msra.mxu0 0
        %659 = vmatprep.mubr.bf16.mxu0 0
        %660 = vmatmul.mubr.bf16.gmra.mrb[0].mxu0 %v622
        %v661 = vpop.f32.mrb[0].mxu0
        %v662 = vadd.f32 0.0, %v661
        %v663 = vpop.f32.mrb[0].mxu0
        %v664 = vpop.f32.mrb[0].mxu0
        %v665 = vpop.f32.mrb[0].mxu0
        %666 = vdwg.mxu0
        %s667 = scalar_lea.vmem %s286, 16 [#allocation2]
        %668 = vst.msk [vmem:[%s667] sm:$0xff] %vm326, %v617
        %669 = vrot.lane.b32.xlu0 %v436, 104
        %v670 = vpop.permute.xlu0 %669
        %671 = vrot.lane.b32.xlu0 %v441, 104
        %v672 = vpop.permute.xlu0 %671
        %v674 = vsel %vm326, %v670, 0
        %v677 = vsel %vm326, %v672, 0
        %679 = vmatprep.subr.bf16.mxu0 0
        %680 = vmatpush1.bf16.xpose.msra.mxu0 %v677
        %681 = vmatprep.subr.bf16.mxu0 0
        %682 = vmatpush1.bf16.xpose.msra.mxu0 0
        %683 = vmatprep.subr.bf16.mxu0 0
        %684 = vmatpush1.bf16.xpose.msra.mxu0 0
        %685 = vmatprep.subr.bf16.mxu0 0
        %686 = vmatpush1.bf16.xpose.msra.mxu0 0
        %687 = vmatprep.subr.bf16.mxu0 0
        %688 = vmatpush1.bf16.xpose.msra.mxu0 0
        %689 = vmatprep.subr.bf16.mxu0 0
        %690 = vmatpush1.bf16.xpose.msra.mxu0 0
        %691 = vmatprep.subr.bf16.mxu0 0
        %692 = vmatpush1.bf16.xpose.msra.mxu0 0
        %693 = vmatprep.subr.bf16.mxu0 0
        %694 = vmatpush1.bf16.xpose.msra.mxu0 0
        %695 = vmatprep.subr.bf16.mxu0 0
        %696 = vmatpush1.bf16.xpose.msra.mxu0 0
        %697 = vmatprep.subr.bf16.mxu0 0
        %698 = vmatpush1.bf16.xpose.msra.mxu0 0
        %699 = vmatprep.subr.bf16.mxu0 0
        %700 = vmatpush1.bf16.xpose.msra.mxu0 0
        %701 = vmatprep.subr.bf16.mxu0 0
        %702 = vmatpush1.bf16.xpose.msra.mxu0 0
        %703 = vmatprep.subr.bf16.mxu0 0
        %704 = vmatpush1.bf16.xpose.msra.mxu0 0
        %705 = vmatprep.subr.bf16.mxu0 0
        %706 = vmatpush1.bf16.xpose.msra.mxu0 0
        %707 = vmatprep.subr.bf16.mxu0 0
        %708 = vmatpush1.bf16.xpose.msra.mxu0 0
        %709 = vmatprep.subr.bf16.mxu0 0
        %710 = vmatpush1.bf16.xpose.msra.mxu0 0
        %711 = vmatprep.mubr.bf16.mxu0 0
        %712 = vmatmul.mubr.bf16.gmra.mrb[0].mxu0 %v674
        %v713 = vpop.f32.mrb[0].mxu0
        %v714 = vadd.f32 0.0, %v713
        %v715 = vpop.f32.mrb[0].mxu0
        %v716 = vpop.f32.mrb[0].mxu0
        %v717 = vpop.f32.mrb[0].mxu0
        %718 = vdwg.mxu0
        %v719 = vmul.f32 %v714, 0.35355338
        %v720 = vsel %vm326, %v719, -inf
        %721 = vmax.xlane.f32.xlu0 %v720
        %v722 = vpop.xlane.xlu0 %721
        %v723 = vsub.f32 %v719, %v722
        %v724 = vmul.f32 %v723, 1.442695
        %v725 = vpow.pop %v724
        %v726 = vsel %vm326, %v725, 0.0
        %727 = vadd.xlane.f32.xlu0 %v726
        %v728 = vpop.xlane.xlu0 %727
        %v729 = vrcp.pop %v728
        %v730 = vmul.f32 %v725, %v729
        %v731 = vpack.c.bf16 %v730, %v730
        %732 = vrot.lane.b32.xlu0 %v505, 104
        %v733 = vpop.permute.xlu0 %732
        %v735 = vsel %vm326, %v731, 0
        %v738 = vsel %vm389, %v733, 0
        %740 = vmatprep.subr.bf16.mxu0 0
        %741 = vmatpush1.bf16.msra.mxu0 %v738
        %742 = vmatprep.subr.bf16.mxu0 0
        %743 = vmatpush1.bf16.msra.mxu0 0
        %744 = vmatprep.subr.bf16.mxu0 0
        %745 = vmatpush1.bf16.msra.mxu0 0
        %746 = vmatprep.subr.bf16.mxu0 0
        %747 = vmatpush1.bf16.msra.mxu0 0
        %748 = vmatprep.subr.bf16.mxu0 0
        %749 = vmatpush1.bf16.msra.mxu0 0
        %750 = vmatprep.subr.bf16.mxu0 0
        %751 = vmatpush1.bf16.msra.mxu0 0
        %752 = vmatprep.subr.bf16.mxu0 0
        %753 = vmatpush1.bf16.msra.mxu0 0
        %754 = vmatprep.subr.bf16.mxu0 0
        %755 = vmatpush1.bf16.msra.mxu0 0
        %756 = vmatprep.subr.bf16.mxu0 0
        %757 = vmatpush1.bf16.msra.mxu0 0
        %758 = vmatprep.subr.bf16.mxu0 0
        %759 = vmatpush1.bf16.msra.mxu0 0
        %760 = vmatprep.subr.bf16.mxu0 0
        %761 = vmatpush1.bf16.msra.mxu0 0
        %762 = vmatprep.subr.bf16.mxu0 0
        %763 = vmatpush1.bf16.msra.mxu0 0
        %764 = vmatprep.subr.bf16.mxu0 0
        %765 = vmatpush1.bf16.msra.mxu0 0
        %766 = vmatprep.subr.bf16.mxu0 0
        %767 = vmatpush1.bf16.msra.mxu0 0
        %768 = vmatprep.subr.bf16.mxu0 0
        %769 = vmatpush1.bf16.msra.mxu0 0
        %770 = vmatprep.subr.bf16.mxu0 0
        %771 = vmatpush1.bf16.msra.mxu0 0
        %772 = vmatprep.mubr.bf16.mxu0 0
        %773 = vmatmul.mubr.bf16.gmra.mrb[0].mxu0 %v735
        %v774 = vpop.f32.mrb[0].mxu0
        %v775 = vadd.f32 0.0, %v774
        %v776 = vpop.f32.mrb[0].mxu0
        %v777 = vpop.f32.mrb[0].mxu0
        %v778 = vpop.f32.mrb[0].mxu0
        %779 = vdwg.mxu0
        %s780 = scalar_lea.vmem %s286, 24 [#allocation2]
        %781 = vst.msk [vmem:[%s780] sm:$0xff] %vm326, %v730
        %783 = vrot.lane.b32.xlu0 %v549, 8
        %v784 = vpop.permute.xlu0 %783
        %787 = vrot.lane.b32.xlu0 %v662, 16
        %v788 = vpop.permute.xlu0 %787
        %791 = vrot.lane.b32.xlu0 %v775, 24
        %v792 = vpop.permute.xlu0 %791
        %v794 = vsel %vm326, %v428, %v784
        %vm795 = vcmask 130048
        %v796 = vsel %vm795, %v794, %v788
        %vm797 = vcmask 195584
        %v798 = vsel %vm797, %v796, %v792
        %v799 = vpack.c.bf16 %v798, %v798
        %vm800 = vcmask 257024
        %801 = vst.msk [vmem:[%s320] sm:$0xf] %vm800, %v799
        %p802 = scmp.lt.s32.totalorder %s24, 1
        %s803 = scalar_select %p802, %s24, 1
        %p804 = scmp.lt.s32.totalorder %s26, 0
        %s805 = scalar_select %p804, %s26, 0
        %p806 = scmp.lt.s32.totalorder %s25, 0
        %s807 = scalar_select %p806, %s25, 0
        %s808 = sadd.s32 %s807, %s805
        %s809 = sadd.s32 %s808, %s803
        %s810 = smul.addr %s809, 4
        %s811 = scalar_lea.vmem %s3, %s810
        %s812 = sand.u32 %s166, 1
        %s813 = scalar_lea.sflag [#allocation3], %s812
        %s814 = sand.u32 %s166, 1
        %s815 = smul.addr %s814, 32
        %s816 = scalar_lea.vmem [#allocation2], %s815
        // Predicated region
        $region33: #{encoder_layer.4} parent=31 // pred_check
          %p817 = pneg %p146
        $region34: #{encoder_layer.4} parent=31 // pred_check_branch
          %819 = sbr.rel (%p817) target = $region36
        $region35: #{encoder_layer.4} parent=31 // pred_region
          _
        $region36: #{encoder_layer.4} parent=31 // pred_fallthru
          _
        // Predicated region
        $region37: #{encoder_layer.4} parent=31 // pred_check
          %p820 = pneg %p176
        $region38: #{encoder_layer.4} parent=31 // pred_check_branch
          %822 = sbr.rel (%p820) target = $region40
        $region39: #{encoder_layer.4} parent=31 // pred_region
          %s823 = smul.u32 4, %s25
          %s825 = ssub.s32 512, 512
          %826 = vsyncadd %s813, %s825
          %s827 = sadd.s32 %s26, %s823
          %s828 = smul.addr %s24, 4
          %s829 = sadd.s32 %s827, %s828
          %s830 = smul.addr %s829, 128
          %s831 = scalar_lea.hbm %s4, %s830
          %s832 = sshll.u32 %s816, 4
          %s833 = int_to_ptr.vmem [resolvable:$true] %s832
          %838 = dma.vmem_to_hbm [thread:$0]  %s833, 512, %s831, %s813, 128, 128, 8
        $region40: #{encoder_layer.4} parent=31 // pred_fallthru
          _
      $region32: #{encoder_layer.4} parent=5 // pred_fallthru
        _
      %p839 = scmp.le.s32.totalorder 2, %s14
      // Predicated region
      $region41: #{encoder_layer.4} parent=5 // pred_check
        %p840 = pneg %p839
      $region42: #{encoder_layer.4} parent=5 // pred_check_branch
        %842 = sbr.rel (%p840) target = $region44
      $region43: #{encoder_layer.4} parent=5 // pred_region
        %s843 = ssub.s32 %s14, 2
        // Predicated region
        $region45: #{encoder_layer.4} parent=43 // pred_check
          %p844 = pneg %p152
        $region46: #{encoder_layer.4} parent=43 // pred_check_branch
          %846 = sbr.rel (%p844) target = $region48
        $region47: #{encoder_layer.4} parent=43 // pred_region
          %p847 = scmp.lt.s32.totalorder %s27, 1
          %s848 = scalar_select %p847, %s27, 1
          %p849 = scmp.lt.s32.totalorder %s29, 0
          %s850 = scalar_select %p849, %s29, 0
          %p851 = scmp.lt.s32.totalorder %s28, 0
          %s852 = scalar_select %p851, %s28, 0
          %s853 = sadd.s32 %s852, %s850
          %s854 = sadd.s32 %s853, %s848
          %s855 = smul.addr %s854, 4
          %s856 = scalar_lea.vmem %s3, %s855
        $region48: #{encoder_layer.4} parent=43 // pred_fallthru
          _
        // Predicated region
        $region49: #{encoder_layer.4} parent=43 // pred_check
          %p857 = pneg %p182
        $region50: #{encoder_layer.4} parent=43 // pred_check_branch
          %859 = sbr.rel (%p857) target = $region52
        $region51: #{encoder_layer.4} parent=43 // pred_region
          %s860 = sand.u32 %s167, 1
          %s861 = scalar_lea.sflag [#allocation3], %s860
          %s862 = sand.u32 %s167, 1
          %s863 = smul.addr %s862, 32
          %s864 = scalar_lea.vmem [#allocation2], %s863
          %865 = dma.done %s861, 512
        $region52: #{encoder_layer.4} parent=43 // pred_fallthru
          _
      $region44: #{encoder_layer.4} parent=5 // pred_fallthru
        _
    $region6: #{encoder_layer.4} parent=1 // loop_footer
      %s18 = sadd.s32 1, %s14
    $region7: #{encoder_layer.4} parent=1 // loop_footer_branch
      %13 = sbr.rel target = $region3
    $region8: #{encoder_layer.4} parent=1 // loop_exit
      _
    %866 = vsyncpa [#allocation3], 1
    %s867 = scalar_lea.sflag [#allocation3], 1
    %868 = vsyncpa %s867, 1

</llo_original>
